<compile_context>
chip_gen: v5e
topology: v5e:2x2
jax: 0.10.0
libtpu: 0.0.40
codegen_flags: <defaults>
</compile_context>

<pallas_src>
import math

import jax
import jax.numpy as jnp
from jax.experimental import pallas as pl
from jax.experimental.pallas import tpu as pltpu


# ----------------------------------------------------------------------------
# Small helpers
# ----------------------------------------------------------------------------
def _ceil_to(x: int, m: int) -> int:
    return -(-int(x) // int(m)) * int(m)


def _tile_bytes(shape, itemsize: int) -> int:
    """Bytes of a VMEM allocation after (8, 128) sublane/lane padding."""
    shape = tuple(int(d) for d in shape)
    if len(shape) == 1:
        shape = (1,) + shape
    lead = 1
    for d in shape[:-2]:
        lead *= d
    return lead * _ceil_to(shape[-2], 8) * _ceil_to(shape[-1], 128) * itemsize


def _const_index_map(ndim: int):
    return lambda bt, tc: (0,) * ndim


def _auto_t_chunk(T: int, b_tile: int, H: int, mm_bytes: int,
                  budget_bytes: int = 8 << 20) -> int:
    """Largest time chunk whose gx+hseq scratch fits a conservative VMEM budget."""
    per_t = b_tile * (_ceil_to(4 * H, 128) + _ceil_to(H, 128)) * mm_bytes
    tc = max(1, min(T, budget_bytes // max(per_t, 1)))
    if tc >= 4:
        tc -= tc % 4          # keep a multiple of 4 for partial unrolling
    return int(tc)


# ----------------------------------------------------------------------------
# Pallas kernel: one (batch_tile, time_chunk) grid step of the multi-layer LSTM
# plus the final output projection.  gx / hseq scratch rows are t*B_TILE + b.
# ----------------------------------------------------------------------------
def _make_lstm_kernel(t_chunk: int, b_tile: int, input_dim: int, hidden_dim: int,
                      out_pad: int, n_layers: int, mm_dtype):
    H = hidden_dim
    R = t_chunk * b_tile
    unroll = True if t_chunk <= 16 else 4     # short chunks: fully unrolled

    def kernel(*refs):
        z_ref = refs[0]                               # (t_chunk, b_tile, input_dim) f32
        layer_refs = refs[1:1 + 3 * n_layers]         # per layer: w_ih, w_hh, bias
        w_lin_ref = refs[1 + 3 * n_layers]            # (H, out_pad) mm_dtype, zero-padded
        out_ref = refs[2 + 3 * n_layers]              # (t_chunk, b_tile, out_pad) f32
        gx_sc = refs[3 + 3 * n_layers]                # (R, 4H) mm_dtype scratch
        hseq_sc = refs[4 + 3 * n_layers]              # (R, H)  mm_dtype scratch
        h_sc = refs[5 + 3 * n_layers]                 # (n_layers, b_tile, H) f32 carry
        c_sc = refs[6 + 3 * n_layers]                 # (n_layers, b_tile, H) f32 carry

        # init_fixed=True: zero (h, c) at the first time chunk of every batch tile.
        @pl.when(pl.program_id(1) == 0)
        def _():
            h_sc[...] = jnp.zeros_like(h_sc)
            c_sc[...] = jnp.zeros_like(c_sc)

        for layer in range(n_layers):
            # NOTE: at H=32 (demo) w_hh easily stays vreg/VMEM-resident; for H>=256
            # bf16 halves the footprint (see review note on vreg pressure).
            w_ih = layer_refs[3 * layer + 0][...]     # (D_l, 4H) mm_dtype, pre-transposed
            w_hh = layer_refs[3 * layer + 1][...]     # (H,   4H) mm_dtype, pre-transposed
            bias = layer_refs[3 * layer + 2][...]     # (1,   4H) f32  = b_ih + b_hh

            if layer == 0:
                x2d = z_ref[...].reshape(R, input_dim).astype(mm_dtype)
            else:
                x2d = hseq_sc[...]                    # previous layer's hidden sequence

            # Hoisted input projection + fused bias: one MXU matmul per layer per
            # chunk, off the serial recurrence path.  f32 accumulate, bf16 store.
            gx_sc[...] = (
                jnp.dot(x2d, w_ih, preferred_element_type=jnp.float32) + bias
            ).astype(mm_dtype)

            def step(t, carry):
                h, c = carry                          # (b_tile, H) f32 each
                row = t * b_tile
                if not isinstance(row, int):
                    row = pl.multiple_of(row, b_tile)  # b_tile % 8 == 0 by construction
                gates = gx_sc[pl.ds(row, b_tile), :].astype(jnp.float32) + jnp.dot(
                    h.astype(mm_dtype), w_hh, preferred_element_type=jnp.float32
                )                                     # (b_tile, 4H) f32
                if H % 128 == 0:
                    # vreg-aligned slices: only do the transcendentals we need.
                    i_g = jax.nn.sigmoid(gates[:, 0 * H:1 * H])
                    f_g = jax.nn.sigmoid(gates[:, 1 * H:2 * H])
                    g_g = jnp.tanh(gates[:, 2 * H:3 * H])
                    o_g = jax.nn.sigmoid(gates[:, 3 * H:4 * H])
                else:
                    # H < 128: full-width EUP passes, then slice (PyTorch order i,f,g,o).
                    sig = jax.nn.sigmoid(gates)
                    th = jnp.tanh(gates)
                    i_g = sig[:, 0 * H:1 * H]
                    f_g = sig[:, 1 * H:2 * H]
                    g_g = th[:, 2 * H:3 * H]
                    o_g = sig[:, 3 * H:4 * H]
                c_new = f_g * c + i_g * g_g
                h_new = o_g * jnp.tanh(c_new)
                hseq_sc[pl.ds(row, b_tile), :] = h_new.astype(mm_dtype)
                return (h_new, c_new)

            h_f, c_f = jax.lax.fori_loop(
                0, t_chunk, step, (h_sc[layer], c_sc[layer]), unroll=unroll)
            h_sc[layer] = h_f
            c_sc[layer] = c_f

        # Final Linear (bias=False): one batched matmul, lane-dense 128-wide store.
        out2d = jnp.dot(hseq_sc[...], w_lin_ref[...],
                        preferred_element_type=jnp.float32)
        out_ref[...] = out2d.reshape(t_chunk, b_tile, out_pad).astype(out_ref.dtype)

    return kernel


# ----------------------------------------------------------------------------
# Wrapper
# ----------------------------------------------------------------------------
def lstm_generator_pallas(z_bf, lstm_params, w_linear, *, hidden_dim, n_layers,
                          matmul_dtype=jnp.bfloat16, t_chunk=None):
    """z_bf: (B, T, input_dim) f32, batch-first.  Returns (B, T, output_dim) f32."""
    B, T, D_in = z_bf.shape
    H = hidden_dim
    out_dim = int(w_linear.shape[0])                 # torch Linear weight: (out, H)
    mm_dtype = jnp.dtype(matmul_dtype)
    mm_bytes = mm_dtype.itemsize

    # ---- batch padding / tiling (sublane alignment; 2 tiles feeds v7x megacore) --
    B_pad = _ceil_to(B, 8)
    B_TILE = B_pad // 2 if (B_pad >= 16 and B_pad % 16 == 0) else B_pad
    n_bt = B_pad // B_TILE

    # ---- time chunking -----------------------------------------------------------
    if t_chunk is None:
        t_chunk = _auto_t_chunk(T, B_TILE, H, mm_bytes)
    t_chunk = max(1, min(int(t_chunk), T))
    T_pad = _ceil_to(T, t_chunk)
    n_tc = T_pad // t_chunk

    OUT_PAD = _ceil_to(out_dim, 128)                 # lane-dense output block

    # ---- layouts: time-major (T, B, D), zero-padded --------------------------------
    z_tm = jnp.transpose(z_bf.astype(jnp.float32), (1, 0, 2))
    z_tm = jnp.pad(z_tm, ((0, T_pad - T), (0, B_pad - B), (0, 0)))

    # ---- weights: pre-transposed, cast to mm_dtype; biases fused & kept f32 --------
    flat_weights = []
    in_specs = [pl.BlockSpec((t_chunk, B_TILE, D_in), lambda bt, tc: (tc, bt, 0))]
    for layer in range(n_layers):
        w_ih, w_hh, b_ih, b_hh = lstm_params[layer]
        flat_weights += [
            jnp.transpose(w_ih).astype(mm_dtype),                       # (D_l, 4H)
            jnp.transpose(w_hh).astype(mm_dtype),                       # (H,   4H)
            (b_ih + b_hh).reshape(1, 4 * H).astype(jnp.float32),        # (1,   4H)
        ]
    w_lin_p = jnp.zeros((H, OUT_PAD), jnp.float32).at[:, :out_dim].set(
        jnp.transpose(w_linear).astype(jnp.float32)).astype(mm_dtype)   # (H, OUT_PAD)
    flat_weights.append(w_lin_p)
    for w in flat_weights:
        in_specs.append(pl.BlockSpec(w.shape, _const_index_map(w.ndim)))

    # ---- VMEM budget: size vmem_limit_bytes to the actual footprint ---------------
    est = 0
    est += 2 * _tile_bytes((t_chunk, B_TILE, D_in), 4)            # z blocks (x2 buf)
    est += 2 * _tile_bytes((t_chunk, B_TILE, OUT_PAD), 4)         # out blocks
    for w in flat_weights:
        est += 2 * _tile_bytes(w.shape, w.dtype.itemsize)         # weight blocks
    est += _tile_bytes((t_chunk * B_TILE, 4 * H), mm_bytes)       # gx scratch
    est += _tile_bytes((t_chunk * B_TILE, H), mm_bytes)           # hseq scratch
    est += 2 * _tile_bytes((n_layers, B_TILE, H), 4)              # (h, c) carry
    try:
        phys = int(pltpu.get_tpu_info().vmem_capacity_bytes)
    except Exception:
        phys = 64 << 20                                           # safe across gens
    vmem_limit = int(min(max(2 * est + (4 << 20), 32 << 20), int(phys * 0.9)))

    kernel = _make_lstm_kernel(t_chunk, B_TILE, D_in, H, OUT_PAD, n_layers, mm_dtype)

    out_tm = pl.pallas_call(
        kernel,
        out_shape=jax.ShapeDtypeStruct((T_pad, B_pad, OUT_PAD), jnp.float32),
        grid=(n_bt, n_tc),
        in_specs=in_specs,
        out_specs=pl.BlockSpec((t_chunk, B_TILE, OUT_PAD), lambda bt, tc: (tc, bt, 0)),
        scratch_shapes=[
            pltpu.VMEM((t_chunk * B_TILE, 4 * H), mm_dtype),      # hoisted projection
            pltpu.VMEM((t_chunk * B_TILE, H), mm_dtype),          # per-layer hidden seq
            pltpu.VMEM((n_layers, B_TILE, H), jnp.float32),       # h carry
            pltpu.VMEM((n_layers, B_TILE, H), jnp.float32),       # c carry
        ],
        compiler_params=pltpu.CompilerParams(
            dimension_semantics=("parallel", "arbitrary"),
            vmem_limit_bytes=vmem_limit),
    )(z_tm, *flat_weights)

    out = out_tm[:T, :B, :out_dim]                                # strip padding
    return jnp.transpose(out, (1, 0, 2))                          # (B, T, out_dim)


# ----------------------------------------------------------------------------
# Pure-JAX reference (correctness oracle)
# ----------------------------------------------------------------------------
def lstm_generator_ref(z_bf, lstm_params, w_linear, *, hidden_dim, n_layers):
    B, T, _ = z_bf.shape
    H = hidden_dim
    x_seq = z_bf.astype(jnp.float32)
    for layer in range(n_layers):
        w_ih, w_hh, b_ih, b_hh = lstm_params[layer]
        bias = b_ih + b_hh

        def step(carry, x_t):
            h, c = carry
            gates = x_t @ w_ih.T + h @ w_hh.T + bias
            i_g = jax.nn.sigmoid(gates[:, 0 * H:1 * H])
            f_g = jax.nn.sigmoid(gates[:, 1 * H:2 * H])
            g_g = jnp.tanh(gates[:, 2 * H:3 * H])
            o_g = jax.nn.sigmoid(gates[:, 3 * H:4 * H])
            c_new = f_g * c + i_g * g_g
            h_new = o_g * jnp.tanh(c_new)
            return (h_new, c_new), h_new

        init = (jnp.zeros((B, H), jnp.float32), jnp.zeros((B, H), jnp.float32))
        _, h_seq = jax.lax.scan(step, init, jnp.transpose(x_seq, (1, 0, 2)))
        x_seq = jnp.transpose(h_seq, (1, 0, 2))
    return x_seq @ w_linear.T


# ----------------------------------------------------------------------------
# Deterministic parameter initialization (matches module __init__ shapes)
# ----------------------------------------------------------------------------
def init_params(key, input_dim, output_dim, hidden_dim, n_layers):
    H = hidden_dim
    k = 1.0 / math.sqrt(H)                        # PyTorch LSTM default init range
    lstm_params = []
    for layer in range(n_layers):
        d_l = input_dim if layer == 0 else H
        key, k1, k2, k3, k4 = jax.random.split(key, 5)
        w_ih = jax.random.uniform(k1, (4 * H, d_l), jnp.float32, -k, k)
        w_hh = jax.random.uniform(k2, (4 * H, H), jnp.float32, -k, k)
        b_ih = jax.random.uniform(k3, (4 * H,), jnp.float32, -k, k)
        b_hh = jax.random.uniform(k4, (4 * H,), jnp.float32, -k, k)
        lstm_params.append((w_ih, w_hh, b_ih, b_hh))
    # Linear(hidden, output, bias=False), xavier_uniform with relu gain sqrt(2)
    key, kl = jax.random.split(key)
    gain = math.sqrt(2.0)
    limit = gain * math.sqrt(6.0 / (H + output_dim))
    w_linear = jax.random.uniform(kl, (output_dim, H), jnp.float32, -limit, limit)
    return lstm_params, w_linear, key


if __name__ == "__main__":
    input_dim, output_dim, hidden_dim, n_layers = 4, 4, 32, 2
    batch_size, n_lags = 8, 8

    key = jax.random.PRNGKey(0)
    lstm_params, w_linear, key = init_params(
        key, input_dim, output_dim, hidden_dim, n_layers)

    # z = 0.1 * randn; zero out first lag; cumulative sum over time (dim=1)
    key, kz = jax.random.split(key)
    z = 0.1 * jax.random.normal(kz, (batch_size, n_lags, input_dim), jnp.float32)
    z = z.at[:, 0, :].set(0.0)
    z = jnp.cumsum(z, axis=1)

    ref = lstm_generator_ref(
        z, lstm_params, w_linear, hidden_dim=hidden_dim, n_layers=n_layers)
    ref = jax.block_until_ready(ref)

    # 1) f32-matmul configuration: tight correctness check of the kernel structure.
    #    t_chunk=4 < n_lags=8 exercises the (h, c) carry across the time grid.
    out_f32 = lstm_generator_pallas(
        z, lstm_params, w_linear, hidden_dim=hidden_dim, n_layers=n_layers,
        matmul_dtype=jnp.float32, t_chunk=4)
    out_f32 = jax.block_until_ready(out_f32)
    assert out_f32.shape == (batch_size, n_lags, output_dim)
    assert jnp.allclose(out_f32, ref, atol=2e-3, rtol=2e-3), \
        "f32 kernel mismatch vs JAX reference"

    # 2) bf16-matmul configuration (the default / performance path): smoke check.
    out_bf16 = lstm_generator_pallas(
        z, lstm_params, w_linear, hidden_dim=hidden_dim, n_layers=n_layers,
        t_chunk=4)
    out_bf16 = jax.block_until_ready(out_bf16)
    assert out_bf16.shape == (batch_size, n_lags, output_dim)
    assert bool(jnp.all(jnp.isfinite(out_bf16)))
    assert float(jnp.max(jnp.abs(out_bf16 - ref))) < 0.2, \
        "bf16 kernel deviates too much from reference"

    print("KERNEL_OK")
</pallas_src>

<mosaic_0001>
module attributes {stable_mosaic.version = 11 : i64} {
  func.func @kernel(%arg0: i32, %arg1: i32, %arg2: memref<4x8x4xf32, #tpu.memory_space<vmem>>, %arg3: memref<4x128xf32, #tpu.memory_space<vmem>>, %arg4: memref<32x128xf32, #tpu.memory_space<vmem>>, %arg5: memref<1x128xf32, #tpu.memory_space<vmem>>, %arg6: memref<32x128xf32, #tpu.memory_space<vmem>>, %arg7: memref<32x128xf32, #tpu.memory_space<vmem>>, %arg8: memref<1x128xf32, #tpu.memory_space<vmem>>, %arg9: memref<32x128xf32, #tpu.memory_space<vmem>>, %arg10: memref<4x8x128xf32, #tpu.memory_space<vmem>>, %arg11: memref<32x128xf32, #tpu.memory_space<vmem>>, %arg12: memref<32x32xf32, #tpu.memory_space<vmem>>, %arg13: memref<2x8x32xf32, #tpu.memory_space<vmem>>, %arg14: memref<2x8x32xf32, #tpu.memory_space<vmem>>) attributes {dimension_semantics = [#tpu.dimension_semantics<parallel>, #tpu.dimension_semantics<arbitrary>], iteration_bounds = array<i64: 1, 2>, scalar_prefetch = 0 : i64, scratch_operands = 4 : i64, tpu.core_type = #tpu.core_type<tc>, window_params = [{transform_indices = @transform_0, window_bounds = array<i64: 4, 8, 4>}, {pipeline_mode = #tpu.pipeline_mode<synchronous>, transform_indices = @transform_1, window_bounds = array<i64: 4, 128>}, {pipeline_mode = #tpu.pipeline_mode<synchronous>, transform_indices = @transform_2, window_bounds = array<i64: 32, 128>}, {pipeline_mode = #tpu.pipeline_mode<synchronous>, transform_indices = @transform_3, window_bounds = array<i64: 1, 128>}, {pipeline_mode = #tpu.pipeline_mode<synchronous>, transform_indices = @transform_4, window_bounds = array<i64: 32, 128>}, {pipeline_mode = #tpu.pipeline_mode<synchronous>, transform_indices = @transform_5, window_bounds = array<i64: 32, 128>}, {pipeline_mode = #tpu.pipeline_mode<synchronous>, transform_indices = @transform_6, window_bounds = array<i64: 1, 128>}, {pipeline_mode = #tpu.pipeline_mode<synchronous>, transform_indices = @transform_7, window_bounds = array<i64: 32, 128>}, {transform_indices = @transform_8, window_bounds = array<i64: 4, 8, 128>}]} {
    %c0_i32 = arith.constant 0 : i32
    %0 = arith.cmpi eq, %arg1, %c0_i32 : i32
    %1 = arith.extui %0 : i1 to i32
    %c0_i32_0 = arith.constant 0 : i32
    %2 = arith.cmpi ne, %1, %c0_i32_0 : i32
    scf.if %2 {
      %cst_98 = arith.constant 0.000000e+00 : f32
      %229 = vector.broadcast %cst_98 : f32 to vector<2x8x32xf32>
      %c0_99 = arith.constant 0 : index
      %c0_100 = arith.constant 0 : index
      %c0_101 = arith.constant 0 : index
      %230 = vector.load %arg13[%c0_99, %c0_100, %c0_101] : memref<2x8x32xf32, #tpu.memory_space<vmem>>, vector<2x8x32xf32>
      tpu.vector_store %arg13[%c0_99, %c0_100, %c0_101], %229 {strides = array<i32>} : memref<2x8x32xf32, #tpu.memory_space<vmem>>, vector<2x8x32xf32>,
      %cst_102 = arith.constant 0.000000e+00 : f32
      %231 = vector.broadcast %cst_102 : f32 to vector<2x8x32xf32>
      %c0_103 = arith.constant 0 : index
      %c0_104 = arith.constant 0 : index
      %c0_105 = arith.constant 0 : index
      %232 = vector.load %arg14[%c0_103, %c0_104, %c0_105] : memref<2x8x32xf32, #tpu.memory_space<vmem>>, vector<2x8x32xf32>
      tpu.vector_store %arg14[%c0_103, %c0_104, %c0_105], %231 {strides = array<i32>} : memref<2x8x32xf32, #tpu.memory_space<vmem>>, vector<2x8x32xf32>,
    } else {
    }
    %c0 = arith.constant 0 : index
    %c0_1 = arith.constant 0 : index
    %3 = vector.load %arg3[%c0, %c0_1] : memref<4x128xf32, #tpu.memory_space<vmem>>, vector<4x128xf32>
    %c0_2 = arith.constant 0 : index
    %c0_3 = arith.constant 0 : index
    %4 = vector.load %arg4[%c0_2, %c0_3] : memref<32x128xf32, #tpu.memory_space<vmem>>, vector<32x128xf32>
    %c0_4 = arith.constant 0 : index
    %c0_5 = arith.constant 0 : index
    %5 = vector.load %arg5[%c0_4, %c0_5] : memref<1x128xf32, #tpu.memory_space<vmem>>, vector<1x128xf32>
    %c0_6 = arith.constant 0 : index
    %c0_7 = arith.constant 0 : index
    %c0_8 = arith.constant 0 : index
    %6 = vector.load %arg2[%c0_6, %c0_7, %c0_8] : memref<4x8x4xf32, #tpu.memory_space<vmem>>, vector<4x8x4xf32>
    %7 = vector.shape_cast %6 : vector<4x8x4xf32> to vector<32x4xf32>
    %cst = arith.constant dense<0.000000e+00> : vector<32x128xf32>
    %8 = tpu.matmul %7, %3, %cst {dimension_numbers = #tpu.dot_dimension_numbers<[1], [0], [0], [1], [0, 0, 1, 1], [], []>} : vector<32x4xf32>, vector<4x128xf32>, vector<32x128xf32> -> vector<32x128xf32>
    %9 = vector.broadcast %5 : vector<1x128xf32> to vector<32x128xf32>
    %10 = arith.addf %8, %9 : vector<32x128xf32>
    %c0_9 = arith.constant 0 : index
    %c0_10 = arith.constant 0 : index
    %11 = vector.load %arg11[%c0_9, %c0_10] : memref<32x128xf32, #tpu.memory_space<vmem>>, vector<32x128xf32>
    tpu.vector_store %arg11[%c0_9, %c0_10], %10 {strides = array<i32>} : memref<32x128xf32, #tpu.memory_space<vmem>>, vector<32x128xf32>,
    %c0_11 = arith.constant 0 : index
    %c0_12 = arith.constant 0 : index
    %c0_13 = arith.constant 0 : index
    %12 = vector.load %arg13[%c0_11, %c0_12, %c0_13] : memref<2x8x32xf32, #tpu.memory_space<vmem>>, vector<1x8x32xf32>
    %13 = vector.shape_cast %12 : vector<1x8x32xf32> to vector<8x32xf32>
    %c0_14 = arith.constant 0 : index
    %c0_15 = arith.constant 0 : index
    %c0_16 = arith.constant 0 : index
    %14 = vector.load %arg14[%c0_14, %c0_15, %c0_16] : memref<2x8x32xf32, #tpu.memory_space<vmem>>, vector<1x8x32xf32>
    %15 = vector.shape_cast %14 : vector<1x8x32xf32> to vector<8x32xf32>
    %c0_i32_17 = arith.constant 0 : i32
    %c8_i32 = arith.constant 8 : i32
    %16 = arith.muli %c0_i32_17, %c8_i32 : i32
    %17 = tpu.assume_multiple %16, 8 : i32
    %18 = arith.index_cast %17 : i32 to index
    %c0_18 = arith.constant 0 : index
    %19 = vector.load %arg11[%18, %c0_18] : memref<32x128xf32, #tpu.memory_space<vmem>>, vector<8x128xf32>
    %cst_19 = arith.constant dense<0.000000e+00> : vector<8x128xf32>
    %20 = tpu.matmul %13, %4, %cst_19 {dimension_numbers = #tpu.dot_dimension_numbers<[1], [0], [0], [1], [0, 0, 1, 1], [], []>} : vector<8x32xf32>, vector<32x128xf32>, vector<8x128xf32> -> vector<8x128xf32>
    %21 = arith.addf %19, %20 : vector<8x128xf32>
    %22 = arith.negf %21 : vector<8x128xf32>
    %23 = math.exp %22 : vector<8x128xf32>
    %cst_20 = arith.constant 1.000000e+00 : f32
    %24 = vector.broadcast %cst_20 : f32 to vector<8x128xf32>
    %25 = arith.addf %24, %23 : vector<8x128xf32>
    %26 = arith.divf %24, %25 : vector<8x128xf32>
    %27 = math.tanh %21 : vector<8x128xf32>
    %28 = vector.extract_strided_slice %26 {offsets = [0, 0], sizes = [8, 32], strides = [1, 1]} : vector<8x128xf32> to vector<8x32xf32>
    %29 = vector.extract_strided_slice %26 {offsets = [0, 32], sizes = [8, 32], strides = [1, 1]} : vector<8x128xf32> to vector<8x32xf32>
    %30 = vector.extract_strided_slice %27 {offsets = [0, 64], sizes = [8, 32], strides = [1, 1]} : vector<8x128xf32> to vector<8x32xf32>
    %31 = vector.extract_strided_slice %26 {offsets = [0, 96], sizes = [8, 32], strides = [1, 1]} : vector<8x128xf32> to vector<8x32xf32>
    %32 = arith.mulf %29, %15 : vector<8x32xf32>
    %33 = arith.mulf %28, %30 : vector<8x32xf32>
    %34 = arith.addf %32, %33 : vector<8x32xf32>
    %35 = math.tanh %34 : vector<8x32xf32>
    %36 = arith.mulf %31, %35 : vector<8x32xf32>
    %37 = arith.index_cast %17 : i32 to index
    %c0_21 = arith.constant 0 : index
    %38 = vector.load %arg12[%37, %c0_21] : memref<32x32xf32, #tpu.memory_space<vmem>>, vector<8x32xf32>
    tpu.vector_store %arg12[%37, %c0_21], %36 {strides = array<i32>} : memref<32x32xf32, #tpu.memory_space<vmem>>, vector<8x32xf32>,
    %c1_i32 = arith.constant 1 : i32
    %c8_i32_22 = arith.constant 8 : i32
    %39 = arith.muli %c1_i32, %c8_i32_22 : i32
    %40 = tpu.assume_multiple %39, 8 : i32
    %41 = arith.index_cast %40 : i32 to index
    %c0_23 = arith.constant 0 : index
    %42 = vector.load %arg11[%41, %c0_23] : memref<32x128xf32, #tpu.memory_space<vmem>>, vector<8x128xf32>
    %cst_24 = arith.constant dense<0.000000e+00> : vector<8x128xf32>
    %43 = tpu.matmul %36, %4, %cst_24 {dimension_numbers = #tpu.dot_dimension_numbers<[1], [0], [0], [1], [0, 0, 1, 1], [], []>} : vector<8x32xf32>, vector<32x128xf32>, vector<8x128xf32> -> vector<8x128xf32>
    %44 = arith.addf %42, %43 : vector<8x128xf32>
    %45 = arith.negf %44 : vector<8x128xf32>
    %46 = math.exp %45 : vector<8x128xf32>
    %cst_25 = arith.constant 1.000000e+00 : f32
    %47 = vector.broadcast %cst_25 : f32 to vector<8x128xf32>
    %48 = arith.addf %47, %46 : vector<8x128xf32>
    %49 = arith.divf %47, %48 : vector<8x128xf32>
    %50 = math.tanh %44 : vector<8x128xf32>
    %51 = vector.extract_strided_slice %49 {offsets = [0, 0], sizes = [8, 32], strides = [1, 1]} : vector<8x128xf32> to vector<8x32xf32>
    %52 = vector.extract_strided_slice %49 {offsets = [0, 32], sizes = [8, 32], strides = [1, 1]} : vector<8x128xf32> to vector<8x32xf32>
    %53 = vector.extract_strided_slice %50 {offsets = [0, 64], sizes = [8, 32], strides = [1, 1]} : vector<8x128xf32> to vector<8x32xf32>
    %54 = vector.extract_strided_slice %49 {offsets = [0, 96], sizes = [8, 32], strides = [1, 1]} : vector<8x128xf32> to vector<8x32xf32>
    %55 = arith.mulf %52, %34 : vector<8x32xf32>
    %56 = arith.mulf %51, %53 : vector<8x32xf32>
    %57 = arith.addf %55, %56 : vector<8x32xf32>
    %58 = math.tanh %57 : vector<8x32xf32>
    %59 = arith.mulf %54, %58 : vector<8x32xf32>
    %60 = arith.index_cast %40 : i32 to index
    %c0_26 = arith.constant 0 : index
    %61 = vector.load %arg12[%60, %c0_26] : memref<32x32xf32, #tpu.memory_space<vmem>>, vector<8x32xf32>
    tpu.vector_store %arg12[%60, %c0_26], %59 {strides = array<i32>} : memref<32x32xf32, #tpu.memory_space<vmem>>, vector<8x32xf32>,
    %c2_i32 = arith.constant 2 : i32
    %c8_i32_27 = arith.constant 8 : i32
    %62 = arith.muli %c2_i32, %c8_i32_27 : i32
    %63 = tpu.assume_multiple %62, 8 : i32
    %64 = arith.index_cast %63 : i32 to index
    %c0_28 = arith.constant 0 : index
    %65 = vector.load %arg11[%64, %c0_28] : memref<32x128xf32, #tpu.memory_space<vmem>>, vector<8x128xf32>
    %cst_29 = arith.constant dense<0.000000e+00> : vector<8x128xf32>
    %66 = tpu.matmul %59, %4, %cst_29 {dimension_numbers = #tpu.dot_dimension_numbers<[1], [0], [0], [1], [0, 0, 1, 1], [], []>} : vector<8x32xf32>, vector<32x128xf32>, vector<8x128xf32> -> vector<8x128xf32>
    %67 = arith.addf %65, %66 : vector<8x128xf32>
    %68 = arith.negf %67 : vector<8x128xf32>
    %69 = math.exp %68 : vector<8x128xf32>
    %cst_30 = arith.constant 1.000000e+00 : f32
    %70 = vector.broadcast %cst_30 : f32 to vector<8x128xf32>
    %71 = arith.addf %70, %69 : vector<8x128xf32>
    %72 = arith.divf %70, %71 : vector<8x128xf32>
    %73 = math.tanh %67 : vector<8x128xf32>
    %74 = vector.extract_strided_slice %72 {offsets = [0, 0], sizes = [8, 32], strides = [1, 1]} : vector<8x128xf32> to vector<8x32xf32>
    %75 = vector.extract_strided_slice %72 {offsets = [0, 32], sizes = [8, 32], strides = [1, 1]} : vector<8x128xf32> to vector<8x32xf32>
    %76 = vector.extract_strided_slice %73 {offsets = [0, 64], sizes = [8, 32], strides = [1, 1]} : vector<8x128xf32> to vector<8x32xf32>
    %77 = vector.extract_strided_slice %72 {offsets = [0, 96], sizes = [8, 32], strides = [1, 1]} : vector<8x128xf32> to vector<8x32xf32>
    %78 = arith.mulf %75, %57 : vector<8x32xf32>
    %79 = arith.mulf %74, %76 : vector<8x32xf32>
    %80 = arith.addf %78, %79 : vector<8x32xf32>
    %81 = math.tanh %80 : vector<8x32xf32>
    %82 = arith.mulf %77, %81 : vector<8x32xf32>
    %83 = arith.index_cast %63 : i32 to index
    %c0_31 = arith.constant 0 : index
    %84 = vector.load %arg12[%83, %c0_31] : memref<32x32xf32, #tpu.memory_space<vmem>>, vector<8x32xf32>
    tpu.vector_store %arg12[%83, %c0_31], %82 {strides = array<i32>} : memref<32x32xf32, #tpu.memory_space<vmem>>, vector<8x32xf32>,
    %c3_i32 = arith.constant 3 : i32
    %c8_i32_32 = arith.constant 8 : i32
    %85 = arith.muli %c3_i32, %c8_i32_32 : i32
    %86 = tpu.assume_multiple %85, 8 : i32
    %87 = arith.index_cast %86 : i32 to index
    %c0_33 = arith.constant 0 : index
    %88 = vector.load %arg11[%87, %c0_33] : memref<32x128xf32, #tpu.memory_space<vmem>>, vector<8x128xf32>
    %cst_34 = arith.constant dense<0.000000e+00> : vector<8x128xf32>
    %89 = tpu.matmul %82, %4, %cst_34 {dimension_numbers = #tpu.dot_dimension_numbers<[1], [0], [0], [1], [0, 0, 1, 1], [], []>} : vector<8x32xf32>, vector<32x128xf32>, vector<8x128xf32> -> vector<8x128xf32>
    %90 = arith.addf %88, %89 : vector<8x128xf32>
    %91 = arith.negf %90 : vector<8x128xf32>
    %92 = math.exp %91 : vector<8x128xf32>
    %cst_35 = arith.constant 1.000000e+00 : f32
    %93 = vector.broadcast %cst_35 : f32 to vector<8x128xf32>
    %94 = arith.addf %93, %92 : vector<8x128xf32>
    %95 = arith.divf %93, %94 : vector<8x128xf32>
    %96 = math.tanh %90 : vector<8x128xf32>
    %97 = vector.extract_strided_slice %95 {offsets = [0, 0], sizes = [8, 32], strides = [1, 1]} : vector<8x128xf32> to vector<8x32xf32>
    %98 = vector.extract_strided_slice %95 {offsets = [0, 32], sizes = [8, 32], strides = [1, 1]} : vector<8x128xf32> to vector<8x32xf32>
    %99 = vector.extract_strided_slice %96 {offsets = [0, 64], sizes = [8, 32], strides = [1, 1]} : vector<8x128xf32> to vector<8x32xf32>
    %100 = vector.extract_strided_slice %95 {offsets = [0, 96], sizes = [8, 32], strides = [1, 1]} : vector<8x128xf32> to vector<8x32xf32>
    %101 = arith.mulf %98, %80 : vector<8x32xf32>
    %102 = arith.mulf %97, %99 : vector<8x32xf32>
    %103 = arith.addf %101, %102 : vector<8x32xf32>
    %104 = math.tanh %103 : vector<8x32xf32>
    %105 = arith.mulf %100, %104 : vector<8x32xf32>
    %106 = arith.index_cast %86 : i32 to index
    %c0_36 = arith.constant 0 : index
    %107 = vector.load %arg12[%106, %c0_36] : memref<32x32xf32, #tpu.memory_space<vmem>>, vector<8x32xf32>
    tpu.vector_store %arg12[%106, %c0_36], %105 {strides = array<i32>} : memref<32x32xf32, #tpu.memory_space<vmem>>, vector<8x32xf32>,
    %c4_i32 = arith.constant 4 : i32
    %c0_37 = arith.constant 0 : index
    %c0_38 = arith.constant 0 : index
    %c0_39 = arith.constant 0 : index
    %108 = vector.load %arg13[%c0_37, %c0_38, %c0_39] : memref<2x8x32xf32, #tpu.memory_space<vmem>>, vector<1x8x32xf32>
    %109 = vector.shape_cast %108 : vector<1x8x32xf32> to vector<8x32xf32>
    %110 = vector.shape_cast %105 : vector<8x32xf32> to vector<1x8x32xf32>
    tpu.vector_store %arg13[%c0_37, %c0_38, %c0_39], %110 {strides = array<i32>} : memref<2x8x32xf32, #tpu.memory_space<vmem>>, vector<1x8x32xf32>,
    %c0_40 = arith.constant 0 : index
    %c0_41 = arith.constant 0 : index
    %c0_42 = arith.constant 0 : index
    %111 = vector.load %arg14[%c0_40, %c0_41, %c0_42] : memref<2x8x32xf32, #tpu.memory_space<vmem>>, vector<1x8x32xf32>
    %112 = vector.shape_cast %111 : vector<1x8x32xf32> to vector<8x32xf32>
    %113 = vector.shape_cast %103 : vector<8x32xf32> to vector<1x8x32xf32>
    tpu.vector_store %arg14[%c0_40, %c0_41, %c0_42], %113 {strides = array<i32>} : memref<2x8x32xf32, #tpu.memory_space<vmem>>, vector<1x8x32xf32>,
    %c0_43 = arith.constant 0 : index
    %c0_44 = arith.constant 0 : index
    %114 = vector.load %arg6[%c0_43, %c0_44] : memref<32x128xf32, #tpu.memory_space<vmem>>, vector<32x128xf32>
    %c0_45 = arith.constant 0 : index
    %c0_46 = arith.constant 0 : index
    %115 = vector.load %arg7[%c0_45, %c0_46] : memref<32x128xf32, #tpu.memory_space<vmem>>, vector<32x128xf32>
    %c0_47 = arith.constant 0 : index
    %c0_48 = arith.constant 0 : index
    %116 = vector.load %arg8[%c0_47, %c0_48] : memref<1x128xf32, #tpu.memory_space<vmem>>, vector<1x128xf32>
    %c0_49 = arith.constant 0 : index
    %c0_50 = arith.constant 0 : index
    %117 = vector.load %arg12[%c0_49, %c0_50] : memref<32x32xf32, #tpu.memory_space<vmem>>, vector<32x32xf32>
    %cst_51 = arith.constant dense<0.000000e+00> : vector<32x128xf32>
    %118 = tpu.matmul %117, %114, %cst_51 {dimension_numbers = #tpu.dot_dimension_numbers<[1], [0], [0], [1], [0, 0, 1, 1], [], []>} : vector<32x32xf32>, vector<32x128xf32>, vector<32x128xf32> -> vector<32x128xf32>
    %119 = vector.broadcast %116 : vector<1x128xf32> to vector<32x128xf32>
    %120 = arith.addf %118, %119 : vector<32x128xf32>
    %c0_52 = arith.constant 0 : index
    %c0_53 = arith.constant 0 : index
    %121 = vector.load %arg11[%c0_52, %c0_53] : memref<32x128xf32, #tpu.memory_space<vmem>>, vector<32x128xf32>
    tpu.vector_store %arg11[%c0_52, %c0_53], %120 {strides = array<i32>} : memref<32x128xf32, #tpu.memory_space<vmem>>, vector<32x128xf32>,
    %c1 = arith.constant 1 : index
    %c0_54 = arith.constant 0 : index
    %c0_55 = arith.constant 0 : index
    %122 = vector.load %arg13[%c1, %c0_54, %c0_55] : memref<2x8x32xf32, #tpu.memory_space<vmem>>, vector<1x8x32xf32>
    %123 = vector.shape_cast %122 : vector<1x8x32xf32> to vector<8x32xf32>
    %c1_56 = arith.constant 1 : index
    %c0_57 = arith.constant 0 : index
    %c0_58 = arith.constant 0 : index
    %124 = vector.load %arg14[%c1_56, %c0_57, %c0_58] : memref<2x8x32xf32, #tpu.memory_space<vmem>>, vector<1x8x32xf32>
    %125 = vector.shape_cast %124 : vector<1x8x32xf32> to vector<8x32xf32>
    %c0_i32_59 = arith.constant 0 : i32
    %c8_i32_60 = arith.constant 8 : i32
    %126 = arith.muli %c0_i32_59, %c8_i32_60 : i32
    %127 = tpu.assume_multiple %126, 8 : i32
    %128 = arith.index_cast %127 : i32 to index
    %c0_61 = arith.constant 0 : index
    %129 = vector.load %arg11[%128, %c0_61] : memref<32x128xf32, #tpu.memory_space<vmem>>, vector<8x128xf32>
    %cst_62 = arith.constant dense<0.000000e+00> : vector<8x128xf32>
    %130 = tpu.matmul %123, %115, %cst_62 {dimension_numbers = #tpu.dot_dimension_numbers<[1], [0], [0], [1], [0, 0, 1, 1], [], []>} : vector<8x32xf32>, vector<32x128xf32>, vector<8x128xf32> -> vector<8x128xf32>
    %131 = arith.addf %129, %130 : vector<8x128xf32>
    %132 = arith.negf %131 : vector<8x128xf32>
    %133 = math.exp %132 : vector<8x128xf32>
    %cst_63 = arith.constant 1.000000e+00 : f32
    %134 = vector.broadcast %cst_63 : f32 to vector<8x128xf32>
    %135 = arith.addf %134, %133 : vector<8x128xf32>
    %136 = arith.divf %134, %135 : vector<8x128xf32>
    %137 = math.tanh %131 : vector<8x128xf32>
    %138 = vector.extract_strided_slice %136 {offsets = [0, 0], sizes = [8, 32], strides = [1, 1]} : vector<8x128xf32> to vector<8x32xf32>
    %139 = vector.extract_strided_slice %136 {offsets = [0, 32], sizes = [8, 32], strides = [1, 1]} : vector<8x128xf32> to vector<8x32xf32>
    %140 = vector.extract_strided_slice %137 {offsets = [0, 64], sizes = [8, 32], strides = [1, 1]} : vector<8x128xf32> to vector<8x32xf32>
    %141 = vector.extract_strided_slice %136 {offsets = [0, 96], sizes = [8, 32], strides = [1, 1]} : vector<8x128xf32> to vector<8x32xf32>
    %142 = arith.mulf %139, %125 : vector<8x32xf32>
    %143 = arith.mulf %138, %140 : vector<8x32xf32>
    %144 = arith.addf %142, %143 : vector<8x32xf32>
    %145 = math.tanh %144 : vector<8x32xf32>
    %146 = arith.mulf %141, %145 : vector<8x32xf32>
    %147 = arith.index_cast %127 : i32 to index
    %c0_64 = arith.constant 0 : index
    %148 = vector.load %arg12[%147, %c0_64] : memref<32x32xf32, #tpu.memory_space<vmem>>, vector<8x32xf32>
    tpu.vector_store %arg12[%147, %c0_64], %146 {strides = array<i32>} : memref<32x32xf32, #tpu.memory_space<vmem>>, vector<8x32xf32>,
    %c1_i32_65 = arith.constant 1 : i32
    %c8_i32_66 = arith.constant 8 : i32
    %149 = arith.muli %c1_i32_65, %c8_i32_66 : i32
    %150 = tpu.assume_multiple %149, 8 : i32
    %151 = arith.index_cast %150 : i32 to index
    %c0_67 = arith.constant 0 : index
    %152 = vector.load %arg11[%151, %c0_67] : memref<32x128xf32, #tpu.memory_space<vmem>>, vector<8x128xf32>
    %cst_68 = arith.constant dense<0.000000e+00> : vector<8x128xf32>
    %153 = tpu.matmul %146, %115, %cst_68 {dimension_numbers = #tpu.dot_dimension_numbers<[1], [0], [0], [1], [0, 0, 1, 1], [], []>} : vector<8x32xf32>, vector<32x128xf32>, vector<8x128xf32> -> vector<8x128xf32>
    %154 = arith.addf %152, %153 : vector<8x128xf32>
    %155 = arith.negf %154 : vector<8x128xf32>
    %156 = math.exp %155 : vector<8x128xf32>
    %cst_69 = arith.constant 1.000000e+00 : f32
    %157 = vector.broadcast %cst_69 : f32 to vector<8x128xf32>
    %158 = arith.addf %157, %156 : vector<8x128xf32>
    %159 = arith.divf %157, %158 : vector<8x128xf32>
    %160 = math.tanh %154 : vector<8x128xf32>
    %161 = vector.extract_strided_slice %159 {offsets = [0, 0], sizes = [8, 32], strides = [1, 1]} : vector<8x128xf32> to vector<8x32xf32>
    %162 = vector.extract_strided_slice %159 {offsets = [0, 32], sizes = [8, 32], strides = [1, 1]} : vector<8x128xf32> to vector<8x32xf32>
    %163 = vector.extract_strided_slice %160 {offsets = [0, 64], sizes = [8, 32], strides = [1, 1]} : vector<8x128xf32> to vector<8x32xf32>
    %164 = vector.extract_strided_slice %159 {offsets = [0, 96], sizes = [8, 32], strides = [1, 1]} : vector<8x128xf32> to vector<8x32xf32>
    %165 = arith.mulf %162, %144 : vector<8x32xf32>
    %166 = arith.mulf %161, %163 : vector<8x32xf32>
    %167 = arith.addf %165, %166 : vector<8x32xf32>
    %168 = math.tanh %167 : vector<8x32xf32>
    %169 = arith.mulf %164, %168 : vector<8x32xf32>
    %170 = arith.index_cast %150 : i32 to index
    %c0_70 = arith.constant 0 : index
    %171 = vector.load %arg12[%170, %c0_70] : memref<32x32xf32, #tpu.memory_space<vmem>>, vector<8x32xf32>
    tpu.vector_store %arg12[%170, %c0_70], %169 {strides = array<i32>} : memref<32x32xf32, #tpu.memory_space<vmem>>, vector<8x32xf32>,
    %c2_i32_71 = arith.constant 2 : i32
    %c8_i32_72 = arith.constant 8 : i32
    %172 = arith.muli %c2_i32_71, %c8_i32_72 : i32
    %173 = tpu.assume_multiple %172, 8 : i32
    %174 = arith.index_cast %173 : i32 to index
    %c0_73 = arith.constant 0 : index
    %175 = vector.load %arg11[%174, %c0_73] : memref<32x128xf32, #tpu.memory_space<vmem>>, vector<8x128xf32>
    %cst_74 = arith.constant dense<0.000000e+00> : vector<8x128xf32>
    %176 = tpu.matmul %169, %115, %cst_74 {dimension_numbers = #tpu.dot_dimension_numbers<[1], [0], [0], [1], [0, 0, 1, 1], [], []>} : vector<8x32xf32>, vector<32x128xf32>, vector<8x128xf32> -> vector<8x128xf32>
    %177 = arith.addf %175, %176 : vector<8x128xf32>
    %178 = arith.negf %177 : vector<8x128xf32>
    %179 = math.exp %178 : vector<8x128xf32>
    %cst_75 = arith.constant 1.000000e+00 : f32
    %180 = vector.broadcast %cst_75 : f32 to vector<8x128xf32>
    %181 = arith.addf %180, %179 : vector<8x128xf32>
    %182 = arith.divf %180, %181 : vector<8x128xf32>
    %183 = math.tanh %177 : vector<8x128xf32>
    %184 = vector.extract_strided_slice %182 {offsets = [0, 0], sizes = [8, 32], strides = [1, 1]} : vector<8x128xf32> to vector<8x32xf32>
    %185 = vector.extract_strided_slice %182 {offsets = [0, 32], sizes = [8, 32], strides = [1, 1]} : vector<8x128xf32> to vector<8x32xf32>
    %186 = vector.extract_strided_slice %183 {offsets = [0, 64], sizes = [8, 32], strides = [1, 1]} : vector<8x128xf32> to vector<8x32xf32>
    %187 = vector.extract_strided_slice %182 {offsets = [0, 96], sizes = [8, 32], strides = [1, 1]} : vector<8x128xf32> to vector<8x32xf32>
    %188 = arith.mulf %185, %167 : vector<8x32xf32>
    %189 = arith.mulf %184, %186 : vector<8x32xf32>
    %190 = arith.addf %188, %189 : vector<8x32xf32>
    %191 = math.tanh %190 : vector<8x32xf32>
    %192 = arith.mulf %187, %191 : vector<8x32xf32>
    %193 = arith.index_cast %173 : i32 to index
    %c0_76 = arith.constant 0 : index
    %194 = vector.load %arg12[%193, %c0_76] : memref<32x32xf32, #tpu.memory_space<vmem>>, vector<8x32xf32>
    tpu.vector_store %arg12[%193, %c0_76], %192 {strides = array<i32>} : memref<32x32xf32, #tpu.memory_space<vmem>>, vector<8x32xf32>,
    %c3_i32_77 = arith.constant 3 : i32
    %c8_i32_78 = arith.constant 8 : i32
    %195 = arith.muli %c3_i32_77, %c8_i32_78 : i32
    %196 = tpu.assume_multiple %195, 8 : i32
    %197 = arith.index_cast %196 : i32 to index
    %c0_79 = arith.constant 0 : index
    %198 = vector.load %arg11[%197, %c0_79] : memref<32x128xf32, #tpu.memory_space<vmem>>, vector<8x128xf32>
    %cst_80 = arith.constant dense<0.000000e+00> : vector<8x128xf32>
    %199 = tpu.matmul %192, %115, %cst_80 {dimension_numbers = #tpu.dot_dimension_numbers<[1], [0], [0], [1], [0, 0, 1, 1], [], []>} : vector<8x32xf32>, vector<32x128xf32>, vector<8x128xf32> -> vector<8x128xf32>
    %200 = arith.addf %198, %199 : vector<8x128xf32>
    %201 = arith.negf %200 : vector<8x128xf32>
    %202 = math.exp %201 : vector<8x128xf32>
    %cst_81 = arith.constant 1.000000e+00 : f32
    %203 = vector.broadcast %cst_81 : f32 to vector<8x128xf32>
    %204 = arith.addf %203, %202 : vector<8x128xf32>
    %205 = arith.divf %203, %204 : vector<8x128xf32>
    %206 = math.tanh %200 : vector<8x128xf32>
    %207 = vector.extract_strided_slice %205 {offsets = [0, 0], sizes = [8, 32], strides = [1, 1]} : vector<8x128xf32> to vector<8x32xf32>
    %208 = vector.extract_strided_slice %205 {offsets = [0, 32], sizes = [8, 32], strides = [1, 1]} : vector<8x128xf32> to vector<8x32xf32>
    %209 = vector.extract_strided_slice %206 {offsets = [0, 64], sizes = [8, 32], strides = [1, 1]} : vector<8x128xf32> to vector<8x32xf32>
    %210 = vector.extract_strided_slice %205 {offsets = [0, 96], sizes = [8, 32], strides = [1, 1]} : vector<8x128xf32> to vector<8x32xf32>
    %211 = arith.mulf %208, %190 : vector<8x32xf32>
    %212 = arith.mulf %207, %209 : vector<8x32xf32>
    %213 = arith.addf %211, %212 : vector<8x32xf32>
    %214 = math.tanh %213 : vector<8x32xf32>
    %215 = arith.mulf %210, %214 : vector<8x32xf32>
    %216 = arith.index_cast %196 : i32 to index
    %c0_82 = arith.constant 0 : index
    %217 = vector.load %arg12[%216, %c0_82] : memref<32x32xf32, #tpu.memory_space<vmem>>, vector<8x32xf32>
    tpu.vector_store %arg12[%216, %c0_82], %215 {strides = array<i32>} : memref<32x32xf32, #tpu.memory_space<vmem>>, vector<8x32xf32>,
    %c4_i32_83 = arith.constant 4 : i32
    %c1_84 = arith.constant 1 : index
    %c0_85 = arith.constant 0 : index
    %c0_86 = arith.constant 0 : index
    %218 = vector.load %arg13[%c1_84, %c0_85, %c0_86] : memref<2x8x32xf32, #tpu.memory_space<vmem>>, vector<1x8x32xf32>
    %219 = vector.shape_cast %218 : vector<1x8x32xf32> to vector<8x32xf32>
    %220 = vector.shape_cast %215 : vector<8x32xf32> to vector<1x8x32xf32>
    tpu.vector_store %arg13[%c1_84, %c0_85, %c0_86], %220 {strides = array<i32>} : memref<2x8x32xf32, #tpu.memory_space<vmem>>, vector<1x8x32xf32>,
    %c1_87 = arith.constant 1 : index
    %c0_88 = arith.constant 0 : index
    %c0_89 = arith.constant 0 : index
    %221 = vector.load %arg14[%c1_87, %c0_88, %c0_89] : memref<2x8x32xf32, #tpu.memory_space<vmem>>, vector<1x8x32xf32>
    %222 = vector.shape_cast %221 : vector<1x8x32xf32> to vector<8x32xf32>
    %223 = vector.shape_cast %213 : vector<8x32xf32> to vector<1x8x32xf32>
    tpu.vector_store %arg14[%c1_87, %c0_88, %c0_89], %223 {strides = array<i32>} : memref<2x8x32xf32, #tpu.memory_space<vmem>>, vector<1x8x32xf32>,
    %c0_90 = arith.constant 0 : index
    %c0_91 = arith.constant 0 : index
    %224 = vector.load %arg12[%c0_90, %c0_91] : memref<32x32xf32, #tpu.memory_space<vmem>>, vector<32x32xf32>
    %c0_92 = arith.constant 0 : index
    %c0_93 = arith.constant 0 : index
    %225 = vector.load %arg9[%c0_92, %c0_93] : memref<32x128xf32, #tpu.memory_space<vmem>>, vector<32x128xf32>
    %cst_94 = arith.constant dense<0.000000e+00> : vector<32x128xf32>
    %226 = tpu.matmul %224, %225, %cst_94 {dimension_numbers = #tpu.dot_dimension_numbers<[1], [0], [0], [1], [0, 0, 1, 1], [], []>} : vector<32x32xf32>, vector<32x128xf32>, vector<32x128xf32> -> vector<32x128xf32>
    %227 = vector.shape_cast %226 : vector<32x128xf32> to vector<4x8x128xf32>
    %c0_95 = arith.constant 0 : index
    %c0_96 = arith.constant 0 : index
    %c0_97 = arith.constant 0 : index
    %228 = vector.load %arg10[%c0_95, %c0_96, %c0_97] : memref<4x8x128xf32, #tpu.memory_space<vmem>>, vector<4x8x128xf32>
    tpu.vector_store %arg10[%c0_95, %c0_96, %c0_97], %227 {strides = array<i32>} : memref<4x8x128xf32, #tpu.memory_space<vmem>>, vector<4x8x128xf32>,
    return
  }
  func.func @transform_0(%arg0: i32, %arg1: i32) -> (i32, i32, i32) {
    %c0_i32 = arith.constant 0 : i32
    %c0_i32_0 = arith.constant 0 : i32
    return %arg1, %arg0, %c0_i32 : i32, i32, i32
  }
  func.func @transform_1(%arg0: i32, %arg1: i32) -> (i32, i32) {
    %c0_i32 = arith.constant 0 : i32
    %c0_i32_0 = arith.constant 0 : i32
    %c0_i32_1 = arith.constant 0 : i32
    return %c0_i32, %c0_i32_0 : i32, i32
  }
  func.func @transform_2(%arg0: i32, %arg1: i32) -> (i32, i32) {
    %c0_i32 = arith.constant 0 : i32
    %c0_i32_0 = arith.constant 0 : i32
    %c0_i32_1 = arith.constant 0 : i32
    return %c0_i32, %c0_i32_0 : i32, i32
  }
  func.func @transform_3(%arg0: i32, %arg1: i32) -> (i32, i32) {
    %c0_i32 = arith.constant 0 : i32
    %c0_i32_0 = arith.constant 0 : i32
    %c0_i32_1 = arith.constant 0 : i32
    return %c0_i32, %c0_i32_0 : i32, i32
  }
  func.func @transform_4(%arg0: i32, %arg1: i32) -> (i32, i32) {
    %c0_i32 = arith.constant 0 : i32
    %c0_i32_0 = arith.constant 0 : i32
    %c0_i32_1 = arith.constant 0 : i32
    return %c0_i32, %c0_i32_0 : i32, i32
  }
  func.func @transform_5(%arg0: i32, %arg1: i32) -> (i32, i32) {
    %c0_i32 = arith.constant 0 : i32
    %c0_i32_0 = arith.constant 0 : i32
    %c0_i32_1 = arith.constant 0 : i32
    return %c0_i32, %c0_i32_0 : i32, i32
  }
  func.func @transform_6(%arg0: i32, %arg1: i32) -> (i32, i32) {
    %c0_i32 = arith.constant 0 : i32
    %c0_i32_0 = arith.constant 0 : i32
    %c0_i32_1 = arith.constant 0 : i32
    return %c0_i32, %c0_i32_0 : i32, i32
  }
  func.func @transform_7(%arg0: i32, %arg1: i32) -> (i32, i32) {
    %c0_i32 = arith.constant 0 : i32
    %c0_i32_0 = arith.constant 0 : i32
    %c0_i32_1 = arith.constant 0 : i32
    return %c0_i32, %c0_i32_0 : i32, i32
  }
  func.func @transform_8(%arg0: i32, %arg1: i32) -> (i32, i32, i32) {
    %c0_i32 = arith.constant 0 : i32
    %c0_i32_0 = arith.constant 0 : i32
    return %arg1, %arg0, %c0_i32 : i32, i32, i32
  }
}

</mosaic_0001>

<llo_original>
// kernel: tpu_custom_call.1
$region0: #{tpu_custom_call.1}
  #allocation0 [shape = 'u32[]', space=smem, size = 0x4, offset = 0x4, fixed_abs, tag = 'smem constant byte address 0x4 - core index']
  #allocation1 [shape = 'u32[72,128]{1,0:T(1,128)}', space=vmem, size = 0x9000, scoped, tag = 'internal scratch']
  #allocation2 [shape = 'f32[32,128]{1,0:T(8,128)}', space=vmem, size = 0x4000, scoped, tag = 'scratch operand']
  #allocation3 [shape = 'f32[32,32]{1,0:T(8,128)}', space=vmem, size = 0x4000, scoped, tag = 'scratch operand']
  #allocation4 [shape = 'f32[2,8,32]{2,1,0:T(8,128)}', space=vmem, size = 0x2000, scoped, tag = 'scratch operand']
  #allocation5 [shape = 'f32[2,8,32]{2,1,0:T(8,128)}', space=vmem, size = 0x2000, scoped, tag = 'scratch operand']
  %s0 = inlined_call_operand.vmem [shape: f32[8,8,4], index: 0, kind: input, shape index: {}]
  %s1 = inlined_call_operand.hbm [shape: f32[4,128], index: 1, kind: input, shape index: {}]
  %s2 = inlined_call_operand.vmem [shape: f32[32,128], index: 2, kind: input, shape index: {}]
  %s3 = inlined_call_operand.vmem [shape: f32[1,128], index: 3, kind: input, shape index: {}]
  %s4 = inlined_call_operand.vmem [shape: f32[32,128], index: 4, kind: input, shape index: {}]
  %s5 = inlined_call_operand.vmem [shape: f32[32,128], index: 5, kind: input, shape index: {}]
  %s6 = inlined_call_operand.vmem [shape: f32[1,128], index: 6, kind: input, shape index: {}]
  %s7 = inlined_call_operand.hbm [shape: f32[32,128], index: 7, kind: input, shape index: {}]
  %s8 = inlined_call_operand.hbm [shape: f32[8,8,128], index: 8, kind: output, shape index: {}]
  %s9 = sld [smem:[#allocation0]]
  $region77: #{tpu_custom_call.1} parent=0
    _
  %s11 = ssub.s32 1, %s9
  %s12 = scalar_select 0, %s11, %s9
  $region1: #{tpu_custom_call.1} parent=0
    #allocation6 [shape = 'u8[2048]{0}', space=vmem, size = 0x800, scoped, tag = 'input window, operand 1, single buffered']
    #allocation7 [shape = 's32[2]{0}', space=sflag, size = 0x8, scoped, tag = 'scoped memory for tpu_custom_call.1']
    #allocation8 [shape = 's32[2]{0}', space=sflag, size = 0x8, scoped, tag = 'scoped memory for tpu_custom_call.1']
    #allocation9 [shape = 'u8[16384]{0}', space=vmem, size = 0x4000, scoped, tag = 'input window, operand 7, single buffered']
    #allocation10 [shape = 's32[1]{0}', space=sflag, size = 0x4, scoped, tag = 'scoped memory for tpu_custom_call.1']
    #allocation11 [shape = 'u8[32768]{0}', space=vmem, size = 0x8000, scoped, tag = 'output window, operand 0']
    %13 = vsyncpa [#allocation7], 0
    %14 = vsyncpa [#allocation10], 0
    %15 = vsyncpa [#allocation8], 0
    %s16 = scalar_lea.sflag [#allocation8], 1
    %17 = vsyncpa %s16, 0
    loop: start=0, step=1, limit=4
    $region2: #{tpu_custom_call.1} parent=1 // loop_pre_header
      _
    $region3: #{tpu_custom_call.1} parent=1 // loop_header
      %s19 = sphi 0, %s23
      %p20 = scmp.ge.s32.totalorder %s19, 4
      %s26 = sphi 0, %s38
      %s27 = sphi 0, %s34
      %s28 = sphi 0, %s26
      %s29 = sphi 0, %s27
      %s30 = sphi 0, %s28
      %s31 = sphi 0, %s29
      %s43 = sphi 0, %s45
      %s46 = sphi 0, %s43
      %s47 = sphi 0, %s46
      %s63 = sphi 0, %s47
      %s67 = sphi 0, %s67
      %s69 = sphi 0, %s67
      %s70 = sphi 0, %s69
      %s84 = sphi 0, %s70
      %s88 = sphi 0, %s88
      %s90 = sphi 0, %s88
      %s91 = sphi 0, %s90
      %s105 = sphi 0, %s91
      %s109 = sphi 0, %s109
      %s111 = sphi 0, %s109
      %s112 = sphi 0, %s111
      %s126 = sphi 0, %s112
      %s130 = sphi 0, %s130
      %s132 = sphi 0, %s130
      %s133 = sphi 0, %s132
      %s147 = sphi 0, %s133
      %s151 = sphi 0, %s151
      %s153 = sphi 0, %s151
      %s154 = sphi 0, %s153
      %s168 = sphi 0, %s154
      %s172 = sphi 0, %s172
      %s174 = sphi 0, %s172
      %s175 = sphi 0, %s174
      %s189 = sphi 0, %s175
      %s193 = sphi 0, %s193
      %s195 = sphi 0, %s193
      %s196 = sphi 0, %s195
      %s210 = sphi 0, %s196
      %s218 = sphi 0, %s220
      %s221 = sphi 0, %s218
      %s222 = sphi 0, %s221
      %s238 = sphi 0, %s222
    $region4: #{tpu_custom_call.1} parent=1 // loop_header_branch
      %22 = sbr.rel (%p20) target = $region8
    $region5: #{tpu_custom_call.1} parent=1 // loop_body
      %s24 = ssub.s32 %s19, 1
      %s25 = ssub.s32 %s19, 2
      %s32 = sadd.s32 1, %s27
      %p33 = scmp.ge.s32.totalorder %s32, 2
      %s34 = scalar_select %p33, 0, %s32
      %s35 = sadd.s32 1, %s26
      %s36 = scalar_select %p33, %s35, %s26
      %p37 = scmp.ge.s32.totalorder %s36, 1
      %s38 = scalar_select %p37, 0, %s36
      %s39 = ssub.s32 %s27, %s34
      %s40 = ssub.s32 %s26, %s38
      %s41 = sor.u32 %s39, %s40
      %p42 = scmp.eq.s32.totalorder %s41, 0
      %s44 = sadd.s32 %s43, 1
      %s45 = scalar_select %p42, %s43, %s44
      %p48 = pneg %p42
      %p49 = scmp.eq.s32.totalorder %s19, 1
      %p50 = por %p48, %p49
      %p51 = scmp.ne.s32.totalorder %s43, %s46
      %p52 = scmp.eq.s32.totalorder %s19, 0
      %p53 = por %p51, %p52
      %p54 = scmp.ne.s32.totalorder %s43, %s46
      %p55 = scmp.eq.s32.totalorder %s24, 1
      %p56 = por %p54, %p55
      %p57 = scmp.ne.s32.totalorder %s46, %s47
      %p58 = scmp.eq.s32.totalorder %s24, 0
      %p59 = por %p57, %p58
      %p60 = scmp.ne.s32.totalorder %s46, %s47
      %p61 = scmp.eq.s32.totalorder %s25, 1
      %p62 = por %p60, %p61
      %p64 = scmp.ne.s32.totalorder %s47, %s63
      %p65 = scmp.eq.s32.totalorder %s25, 0
      %p66 = por %p64, %p65
      %s68 = sadd.s32 %s67, 1
      %p71 = scmp.eq.s32.totalorder %s19, 1
      %p72 = scmp.ne.s32.totalorder %s67, %s69
      %p73 = scmp.eq.s32.totalorder %s19, 0
      %p74 = por %p72, %p73
      %p75 = scmp.ne.s32.totalorder %s67, %s69
      %p76 = scmp.eq.s32.totalorder %s24, 1
      %p77 = por %p75, %p76
      %p78 = scmp.ne.s32.totalorder %s69, %s70
      %p79 = scmp.eq.s32.totalorder %s24, 0
      %p80 = por %p78, %p79
      %p81 = scmp.ne.s32.totalorder %s69, %s70
      %p82 = scmp.eq.s32.totalorder %s25, 1
      %p83 = por %p81, %p82
      %p85 = scmp.ne.s32.totalorder %s70, %s84
      %p86 = scmp.eq.s32.totalorder %s25, 0
      %p87 = por %p85, %p86
      %s89 = sadd.s32 %s88, 1
      %p92 = scmp.eq.s32.totalorder %s19, 1
      %p93 = scmp.ne.s32.totalorder %s88, %s90
      %p94 = scmp.eq.s32.totalorder %s19, 0
      %p95 = por %p93, %p94
      %p96 = scmp.ne.s32.totalorder %s88, %s90
      %p97 = scmp.eq.s32.totalorder %s24, 1
      %p98 = por %p96, %p97
      %p99 = scmp.ne.s32.totalorder %s90, %s91
      %p100 = scmp.eq.s32.totalorder %s24, 0
      %p101 = por %p99, %p100
      %p102 = scmp.ne.s32.totalorder %s90, %s91
      %p103 = scmp.eq.s32.totalorder %s25, 1
      %p104 = por %p102, %p103
      %p106 = scmp.ne.s32.totalorder %s91, %s105
      %p107 = scmp.eq.s32.totalorder %s25, 0
      %p108 = por %p106, %p107
      %s110 = sadd.s32 %s109, 1
      %p113 = scmp.eq.s32.totalorder %s19, 1
      %p114 = scmp.ne.s32.totalorder %s109, %s111
      %p115 = scmp.eq.s32.totalorder %s19, 0
      %p116 = por %p114, %p115
      %p117 = scmp.ne.s32.totalorder %s109, %s111
      %p118 = scmp.eq.s32.totalorder %s24, 1
      %p119 = por %p117, %p118
      %p120 = scmp.ne.s32.totalorder %s111, %s112
      %p121 = scmp.eq.s32.totalorder %s24, 0
      %p122 = por %p120, %p121
      %p123 = scmp.ne.s32.totalorder %s111, %s112
      %p124 = scmp.eq.s32.totalorder %s25, 1
      %p125 = por %p123, %p124
      %p127 = scmp.ne.s32.totalorder %s112, %s126
      %p128 = scmp.eq.s32.totalorder %s25, 0
      %p129 = por %p127, %p128
      %s131 = sadd.s32 %s130, 1
      %p134 = scmp.eq.s32.totalorder %s19, 1
      %p135 = scmp.ne.s32.totalorder %s130, %s132
      %p136 = scmp.eq.s32.totalorder %s19, 0
      %p137 = por %p135, %p136
      %p138 = scmp.ne.s32.totalorder %s130, %s132
      %p139 = scmp.eq.s32.totalorder %s24, 1
      %p140 = por %p138, %p139
      %p141 = scmp.ne.s32.totalorder %s132, %s133
      %p142 = scmp.eq.s32.totalorder %s24, 0
      %p143 = por %p141, %p142
      %p144 = scmp.ne.s32.totalorder %s132, %s133
      %p145 = scmp.eq.s32.totalorder %s25, 1
      %p146 = por %p144, %p145
      %p148 = scmp.ne.s32.totalorder %s133, %s147
      %p149 = scmp.eq.s32.totalorder %s25, 0
      %p150 = por %p148, %p149
      %s152 = sadd.s32 %s151, 1
      %p155 = scmp.eq.s32.totalorder %s19, 1
      %p156 = scmp.ne.s32.totalorder %s151, %s153
      %p157 = scmp.eq.s32.totalorder %s19, 0
      %p158 = por %p156, %p157
      %p159 = scmp.ne.s32.totalorder %s151, %s153
      %p160 = scmp.eq.s32.totalorder %s24, 1
      %p161 = por %p159, %p160
      %p162 = scmp.ne.s32.totalorder %s153, %s154
      %p163 = scmp.eq.s32.totalorder %s24, 0
      %p164 = por %p162, %p163
      %p165 = scmp.ne.s32.totalorder %s153, %s154
      %p166 = scmp.eq.s32.totalorder %s25, 1
      %p167 = por %p165, %p166
      %p169 = scmp.ne.s32.totalorder %s154, %s168
      %p170 = scmp.eq.s32.totalorder %s25, 0
      %p171 = por %p169, %p170
      %s173 = sadd.s32 %s172, 1
      %p176 = scmp.eq.s32.totalorder %s19, 1
      %p177 = scmp.ne.s32.totalorder %s172, %s174
      %p178 = scmp.eq.s32.totalorder %s19, 0
      %p179 = por %p177, %p178
      %p180 = scmp.ne.s32.totalorder %s172, %s174
      %p181 = scmp.eq.s32.totalorder %s24, 1
      %p182 = por %p180, %p181
      %p183 = scmp.ne.s32.totalorder %s174, %s175
      %p184 = scmp.eq.s32.totalorder %s24, 0
      %p185 = por %p183, %p184
      %p186 = scmp.ne.s32.totalorder %s174, %s175
      %p187 = scmp.eq.s32.totalorder %s25, 1
      %p188 = por %p186, %p187
      %p190 = scmp.ne.s32.totalorder %s175, %s189
      %p191 = scmp.eq.s32.totalorder %s25, 0
      %p192 = por %p190, %p191
      %s194 = sadd.s32 %s193, 1
      %p197 = scmp.eq.s32.totalorder %s19, 1
      %p198 = scmp.ne.s32.totalorder %s193, %s195
      %p199 = scmp.eq.s32.totalorder %s19, 0
      %p200 = por %p198, %p199
      %p201 = scmp.ne.s32.totalorder %s193, %s195
      %p202 = scmp.eq.s32.totalorder %s24, 1
      %p203 = por %p201, %p202
      %p204 = scmp.ne.s32.totalorder %s195, %s196
      %p205 = scmp.eq.s32.totalorder %s24, 0
      %p206 = por %p204, %p205
      %p207 = scmp.ne.s32.totalorder %s195, %s196
      %p208 = scmp.eq.s32.totalorder %s25, 1
      %p209 = por %p207, %p208
      %p211 = scmp.ne.s32.totalorder %s196, %s210
      %p212 = scmp.eq.s32.totalorder %s25, 0
      %p213 = por %p211, %p212
      %s214 = ssub.s32 %s27, %s34
      %s215 = ssub.s32 %s26, %s38
      %s216 = sor.u32 %s214, %s215
      %p217 = scmp.eq.s32.totalorder %s216, 0
      %s219 = sadd.s32 %s218, 1
      %s220 = scalar_select %p217, %s218, %s219
      %p223 = pneg %p217
      %p224 = scmp.eq.s32.totalorder %s19, 1
      %p225 = por %p223, %p224
      %p226 = scmp.ne.s32.totalorder %s218, %s221
      %p227 = scmp.eq.s32.totalorder %s19, 0
      %p228 = por %p226, %p227
      %p229 = scmp.ne.s32.totalorder %s218, %s221
      %p230 = scmp.eq.s32.totalorder %s24, 1
      %p231 = por %p229, %p230
      %p232 = scmp.ne.s32.totalorder %s221, %s222
      %p233 = scmp.eq.s32.totalorder %s24, 0
      %p234 = por %p232, %p233
      %p235 = scmp.ne.s32.totalorder %s221, %s222
      %p236 = scmp.eq.s32.totalorder %s25, 1
      %p237 = por %p235, %p236
      %p239 = scmp.ne.s32.totalorder %s222, %s238
      %p240 = scmp.eq.s32.totalorder %s25, 0
      %p241 = por %p239, %p240
      %p242 = scmp.le.s32.totalorder 1, %s19
      %p243 = scmp.lt.s32.totalorder %s19, 3
      %p244 = pnand %p242, %p243
      %p245 = pneg %p244
      // Predicated region
      $region9: #{tpu_custom_call.1} parent=5 // pred_check
        _
      $region10: #{tpu_custom_call.1} parent=5 // pred_check_branch
        %247 = sbr.rel (%p244) target = $region12
      $region11: #{tpu_custom_call.1} parent=5 // pred_region
        %s248 = ssub.s32 %s19, 1
        // Predicated region
        $region13: #{tpu_custom_call.1} parent=11 // pred_check
          %p249 = pneg %p80
        $region14: #{tpu_custom_call.1} parent=11 // pred_check_branch
          %251 = sbr.rel (%p249) target = $region16
        $region15: #{tpu_custom_call.1} parent=11 // pred_region
          %253 = vsyncadd [#allocation7], 0
          %s255 = sshll.u32 %s1, 4
          %s256 = int_to_ptr.hbm [resolvable:$true] %s255
          %s257 = sshll.u32 [#allocation6], 4
          %s258 = int_to_ptr.vmem [resolvable:$true] %s257
          %260 = dma.hbm_to_vmem [thread:$0]  %s256, 64, %s258, [#allocation7]
        $region16: #{tpu_custom_call.1} parent=11 // pred_fallthru
          _
        // Predicated region
        $region17: #{tpu_custom_call.1} parent=11 // pred_check
          %p261 = pneg %p101
        $region18: #{tpu_custom_call.1} parent=11 // pred_check_branch
          %263 = sbr.rel (%p261) target = $region20
        $region19: #{tpu_custom_call.1} parent=11 // pred_region
          _
        $region20: #{tpu_custom_call.1} parent=11 // pred_fallthru
          _
        // Predicated region
        $region21: #{tpu_custom_call.1} parent=11 // pred_check
          %p264 = pneg %p122
        $region22: #{tpu_custom_call.1} parent=11 // pred_check_branch
          %266 = sbr.rel (%p264) target = $region24
        $region23: #{tpu_custom_call.1} parent=11 // pred_region
          _
        $region24: #{tpu_custom_call.1} parent=11 // pred_fallthru
          _
        // Predicated region
        $region25: #{tpu_custom_call.1} parent=11 // pred_check
          %p267 = pneg %p143
        $region26: #{tpu_custom_call.1} parent=11 // pred_check_branch
          %269 = sbr.rel (%p267) target = $region28
        $region27: #{tpu_custom_call.1} parent=11 // pred_region
          _
        $region28: #{tpu_custom_call.1} parent=11 // pred_fallthru
          _
        // Predicated region
        $region29: #{tpu_custom_call.1} parent=11 // pred_check
          %p270 = pneg %p164
        $region30: #{tpu_custom_call.1} parent=11 // pred_check_branch
          %272 = sbr.rel (%p270) target = $region32
        $region31: #{tpu_custom_call.1} parent=11 // pred_region
          _
        $region32: #{tpu_custom_call.1} parent=11 // pred_fallthru
          _
        // Predicated region
        $region33: #{tpu_custom_call.1} parent=11 // pred_check
          %p273 = pneg %p185
        $region34: #{tpu_custom_call.1} parent=11 // pred_check_branch
          %275 = sbr.rel (%p273) target = $region36
        $region35: #{tpu_custom_call.1} parent=11 // pred_region
          _
        $region36: #{tpu_custom_call.1} parent=11 // pred_fallthru
          _
        // Predicated region
        $region37: #{tpu_custom_call.1} parent=11 // pred_check
          %p276 = pneg %p206
        $region38: #{tpu_custom_call.1} parent=11 // pred_check_branch
          %278 = sbr.rel (%p276) target = $region40
        $region39: #{tpu_custom_call.1} parent=11 // pred_region
          %280 = vsyncadd [#allocation10], 0
          %s281 = sshll.u32 %s7, 4
          %s282 = int_to_ptr.hbm [resolvable:$true] %s281
          %s283 = sshll.u32 [#allocation9], 4
          %s284 = int_to_ptr.vmem [resolvable:$true] %s283
          %289 = dma.hbm_to_vmem [thread:$0]  %s282, 512, %s284, [#allocation10], 128, 128, 8
        $region40: #{tpu_custom_call.1} parent=11 // pred_fallthru
          _
      $region12: #{tpu_custom_call.1} parent=5 // pred_fallthru
        _
      %p290 = scmp.lt.s32.totalorder %s19, 2
      // Predicated region
      $region41: #{tpu_custom_call.1} parent=5 // pred_check
        %p291 = pneg %p290
      $region42: #{tpu_custom_call.1} parent=5 // pred_check_branch
        %293 = sbr.rel (%p291) target = $region44
      $region43: #{tpu_custom_call.1} parent=5 // pred_region
        // Predicated region
        $region45: #{tpu_custom_call.1} parent=43 // pred_check
          %p294 = pneg %p53
        $region46: #{tpu_custom_call.1} parent=43 // pred_check_branch
          %296 = sbr.rel (%p294) target = $region48
        $region47: #{tpu_custom_call.1} parent=43 // pred_region
          %s297 = smul.u32 4, %s27
          %p298 = scmp.lt.s32.totalorder %s297, 7
          %s299 = scalar_select %p298, %s297, 7
          %p300 = scmp.lt.s32.totalorder %s26, 0
          %s301 = scalar_select %p300, %s26, 0
          %s302 = sadd.s32 %s301, %s299
          %s303 = smul.addr %s302, 8
          %s304 = scalar_lea.vmem %s0, %s303
          %s305 = smul.u32 4, %s27
        $region48: #{tpu_custom_call.1} parent=43 // pred_fallthru
          _
      $region44: #{tpu_custom_call.1} parent=5 // pred_fallthru
        _
      %p306 = scmp.le.s32.totalorder 1, %s19
      %p307 = scmp.lt.s32.totalorder %s19, 3
      %p308 = pnand %p306, %p307
      %p309 = pneg %p308
      // Predicated region
      $region49: #{tpu_custom_call.1} parent=5 // pred_check
        _
      $region50: #{tpu_custom_call.1} parent=5 // pred_check_branch
        %311 = sbr.rel (%p308) target = $region52
      $region51: #{tpu_custom_call.1} parent=5 // pred_region
        %s312 = ssub.s32 %s19, 1
        // Predicated region
        $region53: #{tpu_custom_call.1} parent=51 // pred_check
          %p313 = pneg %p80
        $region54: #{tpu_custom_call.1} parent=51 // pred_check_branch
          %315 = sbr.rel (%p313) target = $region56
        $region55: #{tpu_custom_call.1} parent=51 // pred_region
          %317 = dma.done [#allocation7], 64
        $region56: #{tpu_custom_call.1} parent=51 // pred_fallthru
          _
        // Predicated region
        $region57: #{tpu_custom_call.1} parent=51 // pred_check
          %p318 = pneg %p206
        $region58: #{tpu_custom_call.1} parent=51 // pred_check_branch
          %320 = sbr.rel (%p318) target = $region60
        $region59: #{tpu_custom_call.1} parent=51 // pred_region
          %322 = dma.done [#allocation10], 512
        $region60: #{tpu_custom_call.1} parent=51 // pred_fallthru
          _
        %s323 = smul.u32 4, %s29
        %p324 = scmp.lt.s32.totalorder %s323, 7
        %s325 = scalar_select %p324, %s323, 7
        %p326 = scmp.lt.s32.totalorder %s28, 0
        %s327 = scalar_select %p326, %s28, 0
        %s328 = sadd.s32 %s327, %s325
        %s329 = smul.addr %s328, 8
        %s330 = scalar_lea.vmem %s0, %s329
        %p331 = pneg %p59
        %p332 = pneg %p56
        %p333 = pneg %p80
        %p334 = pneg %p77
        %p335 = pneg %p101
        %p336 = pneg %p98
        %p337 = pneg %p122
        %p338 = pneg %p119
        %p339 = pneg %p143
        %p340 = pneg %p140
        %p341 = pneg %p164
        %p342 = pneg %p161
        %p343 = pneg %p185
        %p344 = pneg %p182
        %p345 = pneg %p206
        %p346 = pneg %p203
        %p347 = pneg %p234
        %p348 = pneg %p231
        %s349 = sand.u32 %s221, 1
        %s350 = scalar_lea.sflag [#allocation8], %s349
        %s351 = sand.u32 %s221, 1
        %s352 = smul.addr %s351, 32
        %s353 = scalar_lea.vmem [#allocation11], %s352
        %s354 = smul.u32 4, %s29
        %p355 = scmp.lt.s32.totalorder %s354, 7
        %s356 = scalar_select %p355, %s354, 7
        %p357 = scmp.lt.s32.totalorder %s28, 0
        %s358 = scalar_select %p357, %s28, 0
        %s359 = sadd.s32 %s358, %s356
        %s360 = smul.addr %s359, 8
        %s361 = scalar_lea.vmem %s0, %s360
        %s362 = smul.u32 4, %s29
        %s363 = smul.u32 4, %s29
        %p364 = scmp.eq.s32.totalorder %s29, 0
        // Predicated region
        $region61: #{tpu_custom_call.1} parent=51 // pred_check
          %p365 = pneg %p364
        $region62: #{tpu_custom_call.1} parent=51 // pred_check_branch
          %367 = sbr.rel (%p365) target = $region64
        $region63: #{tpu_custom_call.1} parent=51 // pred_region
          %vm368 = vcmask 261120
          %369 = vst.msk [vmem:[#allocation4] sm:$0xff] %vm368, 0.0
          %370 = vst.msk [vmem:[#allocation4 + $0x8] sm:$0xff] %vm368, 0.0
          %371 = vst.msk [vmem:[#allocation5] sm:$0xff] %vm368, 0.0
          %372 = vst.msk [vmem:[#allocation5 + $0x8] sm:$0xff] %vm368, 0.0
        $region64: #{tpu_custom_call.1} parent=51 // pred_fallthru
          _
        %v373 = vld [vmem:[#allocation6] sm:$0xf]
        %v374 = vld [vmem:[%s2] sm:$0xff]
        %v375 = vld [vmem:[%s2 + $0x8] sm:$0xff]
        %v376 = vld [vmem:[%s2 + $0x10] sm:$0xff]
        %v377 = vld [vmem:[%s2 + $0x18] sm:$0xff]
        %v378 = vld [vmem:[%s3] sm:$0x1]
        %v379 = vld [vmem:[%s361] sm:$0xff]
        %v380 = vld [vmem:[%s361 + $0x8] sm:$0xff]
        %v381 = vld [vmem:[%s361 + $0x10] sm:$0xff]
        %v382 = vld [vmem:[%s361 + $0x18] sm:$0xff]
        %v384 = vperm.slane %v378, 0
        %vm386 = vcmask 31744
        %v388 = vsel %vm386, %v379, 0
        %v391 = vsel %vm386, %v380, 0
        %v394 = vsel %vm386, %v381, 0
        %v397 = vsel %vm386, %v382, 0
        %vm399 = vcmask 1043456
        %v401 = vsel %vm399, %v373, 0
        %403 = vmatpush.msra.mxu0 0.0
        %404 = vmatpush.msra.mxu0 0.0
        %405 = vmatpush.msra.mxu0 0.0
        %406 = vmatpush.msra.mxu0 0.0
        %407 = vmatpush.msra.mxu0 0.0
        %408 = vmatpush.msra.mxu0 0.0
        %409 = vmatpush.msra.mxu0 0.0
        %410 = vmatpush.msra.mxu0 0.0
        %411 = vmatpush.msra.mxu0 0.0
        %412 = vmatpush.msra.mxu0 0.0
        %413 = vmatpush.msra.mxu0 0.0
        %414 = vmatpush.msra.mxu0 0.0
        %415 = vmatpush.msra.mxu0 0.0
        %416 = vmatpush.msra.mxu0 0.0
        %417 = vmatpush.msra.mxu0 0.0
        %418 = vmatpush.msra.mxu0 %v401
        %419 = vmatmul.f32.gmra.mxu0 %v388
        %v420 = vpop.f32.mrf.mxu0
        %v421 = vadd.f32 %v384, %v420
        %422 = vmatmul.f32.gmra.mxu0 %v391
        %v423 = vpop.f32.mrf.mxu0
        %v424 = vadd.f32 %v384, %v423
        %425 = vmatmul.f32.gmra.mxu0 %v394
        %v426 = vpop.f32.mrf.mxu0
        %v427 = vadd.f32 %v384, %v426
        %428 = vmatmul.f32.gmra.mxu0 %v397
        %v429 = vpop.f32.mrf.mxu0
        %v430 = vadd.f32 %v384, %v429
        %431 = vdwg.mxu0
        %432 = vst [vmem:[#allocation2] sm:$0xff] %v421
        %433 = vst [vmem:[#allocation2 + $0x8] sm:$0xff] %v424
        %434 = vst [vmem:[#allocation2 + $0x10] sm:$0xff] %v427
        %435 = vst [vmem:[#allocation2 + $0x18] sm:$0xff] %v430
        %v436 = vld [vmem:[#allocation4] sm:$0xff]
        %v437 = vld [vmem:[#allocation5] sm:$0xff]
        %v438 = vld [vmem:[#allocation2] sm:$0xff]
        %vm439 = vcmask 261120
        %v441 = vsel %vm439, %v436, 0
        %443 = vmatpush.msra.mxu0 0.0
        %444 = vmatpush.msra.mxu0 0.0
        %445 = vmatpush.msra.mxu0 0.0
        %446 = vmatpush.msra.mxu0 0.0
        %447 = vmatpush.msra.mxu0 0.0
        %448 = vmatpush.msra.mxu0 0.0
        %449 = vmatpush.msra.mxu0 0.0
        %450 = vmatpush.msra.mxu0 0.0
        %451 = vmatpush.msra.mxu0 0.0
        %452 = vmatpush.msra.mxu0 0.0
        %453 = vmatpush.msra.mxu0 0.0
        %454 = vmatpush.msra.mxu0 0.0
        %455 = vmatpush.msra.mxu0 %v377
        %456 = vmatpush.msra.mxu0 %v376
        %457 = vmatpush.msra.mxu0 %v375
        %458 = vmatpush.msra.mxu0 %v374
        %459 = vmatmul.f32.gmra.mxu0 %v441
        %v460 = vpop.f32.mrf.mxu0
        %v461 = vadd.f32 0.0, %v460
        %462 = vdwg.mxu0
        %v463 = vadd.f32 %v438, %v461
        %v464 = vxor.u32 %v463, 2147483648
        %v465 = vmul.f32 %v464, 1.442695
        %v466 = vpow.pop %v465
        %v467 = vadd.f32 %v466, 1.0
        %v468 = vrcp.pop %v467
        %v469 = vmul.f32 %v467, %v468
        %v470 = vsub.f32 1.0, %v469
        %v471 = vmul.f32 %v468, %v470
        %v472 = vadd.f32 %v468, %v471
        %vm473 = vweird.f32 %v467
        %vm474 = vweird.f32 %v468
        %vm475 = vmor %vm473, %vm474
        %v476 = vsel %vm475, %v468, %v472
        %v477 = vand.u32 2147483647, %v467
        %vm478 = vcmp.eq.f32.partialorder %v477, 8.507059e+37
        %v479 = vand.u32 %v467, 2147483648
        %v480 = vor.u32 1.1754944e-38, %v479
        %v481 = vsel %vm478, %v480, %v476
        %v482 = vmul.f32 1.0, %v481
        %v483 = vtanh.pop %v463
        %485 = vrot.lane.b32.xlu0 %v437, 32
        %v486 = vpop.permute.xlu0 %485
        %v488 = vmul.f32 %v482, %v486
        %490 = vrot.lane.b32.xlu0 %v483, 64
        %v491 = vpop.permute.xlu0 %490
        %v493 = vmul.f32 %v482, %v491
        %495 = vrot.lane.b32.xlu0 %v493, 32
        %v496 = vpop.permute.xlu0 %495
        %v498 = vadd.f32 %v488, %v496
        %v499 = vtanh.pop %v498
        %501 = vrot.lane.b32.xlu0 %v499, 64
        %v502 = vpop.permute.xlu0 %501
        %v504 = vmul.f32 %v482, %v502
        %506 = vrot.lane.b32.xlu0 %v504, 32
        %v507 = vpop.permute.xlu0 %506
        %509 = vst.msk [vmem:[#allocation3] sm:$0xff] %vm439, %v507
        %s510 = scalar_lea.vmem [#allocation2], 8
        %v511 = vld [vmem:[%s510] sm:$0xff]
        %v512 = vsel %vm439, %v507, 0
        %514 = vmatpush.msra.mxu0 0.0
        %515 = vmatpush.msra.mxu0 0.0
        %516 = vmatpush.msra.mxu0 0.0
        %517 = vmatpush.msra.mxu0 0.0
        %518 = vmatpush.msra.mxu0 0.0
        %519 = vmatpush.msra.mxu0 0.0
        %520 = vmatpush.msra.mxu0 0.0
        %521 = vmatpush.msra.mxu0 0.0
        %522 = vmatpush.msra.mxu0 0.0
        %523 = vmatpush.msra.mxu0 0.0
        %524 = vmatpush.msra.mxu0 0.0
        %525 = vmatpush.msra.mxu0 0.0
        %526 = vmatpush.msra.mxu0 %v377
        %527 = vmatpush.msra.mxu0 %v376
        %528 = vmatpush.msra.mxu0 %v375
        %529 = vmatpush.msra.mxu0 %v374
        %530 = vmatmul.f32.gmra.mxu0 %v512
        %v531 = vpop.f32.mrf.mxu0
        %v532 = vadd.f32 0.0, %v531
        %533 = vdwg.mxu0
        %v534 = vadd.f32 %v511, %v532
        %v535 = vxor.u32 %v534, 2147483648
        %v536 = vmul.f32 %v535, 1.442695
        %v537 = vpow.pop %v536
        %v538 = vadd.f32 %v537, 1.0
        %v539 = vrcp.pop %v538
        %v540 = vmul.f32 %v538, %v539
        %v541 = vsub.f32 1.0, %v540
        %v542 = vmul.f32 %v539, %v541
        %v543 = vadd.f32 %v539, %v542
        %vm544 = vweird.f32 %v538
        %vm545 = vweird.f32 %v539
        %vm546 = vmor %vm544, %vm545
        %v547 = vsel %vm546, %v539, %v543
        %v548 = vand.u32 2147483647, %v538
        %vm549 = vcmp.eq.f32.partialorder %v548, 8.507059e+37
        %v550 = vand.u32 %v538, 2147483648
        %v551 = vor.u32 1.1754944e-38, %v550
        %v552 = vsel %vm549, %v551, %v547
        %v553 = vmul.f32 1.0, %v552
        %v554 = vtanh.pop %v534
        %v555 = vmul.f32 %v553, %v498
        %557 = vrot.lane.b32.xlu0 %v554, 64
        %v558 = vpop.permute.xlu0 %557
        %v560 = vmul.f32 %v553, %v558
        %562 = vrot.lane.b32.xlu0 %v560, 32
        %v563 = vpop.permute.xlu0 %562
        %v565 = vadd.f32 %v555, %v563
        %v566 = vtanh.pop %v565
        %568 = vrot.lane.b32.xlu0 %v566, 64
        %v569 = vpop.permute.xlu0 %568
        %v571 = vmul.f32 %v553, %v569
        %573 = vrot.lane.b32.xlu0 %v571, 32
        %v574 = vpop.permute.xlu0 %573
        %s576 = scalar_lea.vmem [#allocation3], 8
        %577 = vst.msk [vmem:[%s576] sm:$0xff] %vm439, %v574
        %s578 = scalar_lea.vmem [#allocation2], 16
        %v579 = vld [vmem:[%s578] sm:$0xff]
        %v580 = vsel %vm439, %v574, 0
        %582 = vmatpush.msra.mxu0 0.0
        %583 = vmatpush.msra.mxu0 0.0
        %584 = vmatpush.msra.mxu0 0.0
        %585 = vmatpush.msra.mxu0 0.0
        %586 = vmatpush.msra.mxu0 0.0
        %587 = vmatpush.msra.mxu0 0.0
        %588 = vmatpush.msra.mxu0 0.0
        %589 = vmatpush.msra.mxu0 0.0
        %590 = vmatpush.msra.mxu0 0.0
        %591 = vmatpush.msra.mxu0 0.0
        %592 = vmatpush.msra.mxu0 0.0
        %593 = vmatpush.msra.mxu0 0.0
        %594 = vmatpush.msra.mxu0 %v377
        %595 = vmatpush.msra.mxu0 %v376
        %596 = vmatpush.msra.mxu0 %v375
        %597 = vmatpush.msra.mxu0 %v374
        %598 = vmatmul.f32.gmra.mxu0 %v580
        %v599 = vpop.f32.mrf.mxu0
        %v600 = vadd.f32 0.0, %v599
        %601 = vdwg.mxu0
        %v602 = vadd.f32 %v579, %v600
        %v603 = vxor.u32 %v602, 2147483648
        %v604 = vmul.f32 %v603, 1.442695
        %v605 = vpow.pop %v604
        %v606 = vadd.f32 %v605, 1.0
        %v607 = vrcp.pop %v606
        %v608 = vmul.f32 %v606, %v607
        %v609 = vsub.f32 1.0, %v608
        %v610 = vmul.f32 %v607, %v609
        %v611 = vadd.f32 %v607, %v610
        %vm612 = vweird.f32 %v606
        %vm613 = vweird.f32 %v607
        %vm614 = vmor %vm612, %vm613
        %v615 = vsel %vm614, %v607, %v611
        %v616 = vand.u32 2147483647, %v606
        %vm617 = vcmp.eq.f32.partialorder %v616, 8.507059e+37
        %v618 = vand.u32 %v606, 2147483648
        %v619 = vor.u32 1.1754944e-38, %v618
        %v620 = vsel %vm617, %v619, %v615
        %v621 = vmul.f32 1.0, %v620
        %v622 = vtanh.pop %v602
        %v623 = vmul.f32 %v621, %v565
        %625 = vrot.lane.b32.xlu0 %v622, 64
        %v626 = vpop.permute.xlu0 %625
        %v628 = vmul.f32 %v621, %v626
        %630 = vrot.lane.b32.xlu0 %v628, 32
        %v631 = vpop.permute.xlu0 %630
        %v633 = vadd.f32 %v623, %v631
        %v634 = vtanh.pop %v633
        %636 = vrot.lane.b32.xlu0 %v634, 64
        %v637 = vpop.permute.xlu0 %636
        %v639 = vmul.f32 %v621, %v637
        %641 = vrot.lane.b32.xlu0 %v639, 32
        %v642 = vpop.permute.xlu0 %641
        %s644 = scalar_lea.vmem [#allocation3], 16
        %645 = vst.msk [vmem:[%s644] sm:$0xff] %vm439, %v642
        %s646 = scalar_lea.vmem [#allocation2], 24
        %v647 = vld [vmem:[%s646] sm:$0xff]
        %v648 = vsel %vm439, %v642, 0
        %650 = vmatpush.msra.mxu0 0.0
        %651 = vmatpush.msra.mxu0 0.0
        %652 = vmatpush.msra.mxu0 0.0
        %653 = vmatpush.msra.mxu0 0.0
        %654 = vmatpush.msra.mxu0 0.0
        %655 = vmatpush.msra.mxu0 0.0
        %656 = vmatpush.msra.mxu0 0.0
        %657 = vmatpush.msra.mxu0 0.0
        %658 = vmatpush.msra.mxu0 0.0
        %659 = vmatpush.msra.mxu0 0.0
        %660 = vmatpush.msra.mxu0 0.0
        %661 = vmatpush.msra.mxu0 0.0
        %662 = vmatpush.msra.mxu0 %v377
        %663 = vmatpush.msra.mxu0 %v376
        %664 = vmatpush.msra.mxu0 %v375
        %665 = vmatpush.msra.mxu0 %v374
        %666 = vmatmul.f32.gmra.mxu0 %v648
        %v667 = vpop.f32.mrf.mxu0
        %v668 = vadd.f32 0.0, %v667
        %669 = vdwg.mxu0
        %v670 = vadd.f32 %v647, %v668
        %v671 = vxor.u32 %v670, 2147483648
        %v672 = vmul.f32 %v671, 1.442695
        %v673 = vpow.pop %v672
        %v674 = vadd.f32 %v673, 1.0
        %v675 = vrcp.pop %v674
        %v676 = vmul.f32 %v674, %v675
        %v677 = vsub.f32 1.0, %v676
        %v678 = vmul.f32 %v675, %v677
        %v679 = vadd.f32 %v675, %v678
        %vm680 = vweird.f32 %v674
        %vm681 = vweird.f32 %v675
        %vm682 = vmor %vm680, %vm681
        %v683 = vsel %vm682, %v675, %v679
        %v684 = vand.u32 2147483647, %v674
        %vm685 = vcmp.eq.f32.partialorder %v684, 8.507059e+37
        %v686 = vand.u32 %v674, 2147483648
        %v687 = vor.u32 1.1754944e-38, %v686
        %v688 = vsel %vm685, %v687, %v683
        %v689 = vmul.f32 1.0, %v688
        %v690 = vtanh.pop %v670
        %v691 = vmul.f32 %v689, %v633
        %693 = vrot.lane.b32.xlu0 %v690, 64
        %v694 = vpop.permute.xlu0 %693
        %v696 = vmul.f32 %v689, %v694
        %698 = vrot.lane.b32.xlu0 %v696, 32
        %v699 = vpop.permute.xlu0 %698
        %v701 = vadd.f32 %v691, %v699
        %v702 = vtanh.pop %v701
        %704 = vrot.lane.b32.xlu0 %v702, 64
        %v705 = vpop.permute.xlu0 %704
        %v707 = vmul.f32 %v689, %v705
        %709 = vrot.lane.b32.xlu0 %v707, 32
        %v710 = vpop.permute.xlu0 %709
        %s712 = scalar_lea.vmem [#allocation3], 24
        %713 = vst.msk [vmem:[%s712] sm:$0xff] %vm439, %v710
        %714 = vst.msk [vmem:[#allocation4] sm:$0xff] %vm439, %v710
        %716 = vrot.lane.b32.xlu0 %v701, 96
        %v717 = vpop.permute.xlu0 %716
        %719 = vst.msk [vmem:[#allocation5] sm:$0xff] %vm439, %v717
        %v720 = vld [vmem:[%s4] sm:$0xff]
        %v721 = vld [vmem:[%s4 + $0x8] sm:$0xff]
        %v722 = vld [vmem:[%s4 + $0x10] sm:$0xff]
        %v723 = vld [vmem:[%s4 + $0x18] sm:$0xff]
        %v724 = vld [vmem:[%s5] sm:$0xff]
        %v725 = vld [vmem:[%s5 + $0x8] sm:$0xff]
        %v726 = vld [vmem:[%s5 + $0x10] sm:$0xff]
        %v727 = vld [vmem:[%s5 + $0x18] sm:$0xff]
        %v728 = vld [vmem:[%s6] sm:$0x1]
        %v729 = vld [vmem:[#allocation3] sm:$0xff]
        %v730 = vld [vmem:[#allocation3 + $0x8] sm:$0xff]
        %v731 = vld [vmem:[#allocation3 + $0x10] sm:$0xff]
        %v732 = vld [vmem:[#allocation3 + $0x18] sm:$0xff]
        %v734 = vperm.slane %v728, 0
        %v737 = vsel %vm439, %v729, 0
        %v740 = vsel %vm439, %v730, 0
        %v743 = vsel %vm439, %v731, 0
        %v746 = vsel %vm439, %v732, 0
        %748 = vmatpush.msra.mxu0 0.0
        %749 = vmatpush.msra.mxu0 0.0
        %750 = vmatpush.msra.mxu0 0.0
        %751 = vmatpush.msra.mxu0 0.0
        %752 = vmatpush.msra.mxu0 0.0
        %753 = vmatpush.msra.mxu0 0.0
        %754 = vmatpush.msra.mxu0 0.0
        %755 = vmatpush.msra.mxu0 0.0
        %756 = vmatpush.msra.mxu0 0.0
        %757 = vmatpush.msra.mxu0 0.0
        %758 = vmatpush.msra.mxu0 0.0
        %759 = vmatpush.msra.mxu0 0.0
        %760 = vmatpush.msra.mxu0 %v723
        %761 = vmatpush.msra.mxu0 %v722
        %762 = vmatpush.msra.mxu0 %v721
        %763 = vmatpush.msra.mxu0 %v720
        %764 = vmatmul.f32.gmra.mxu0 %v737
        %v765 = vpop.f32.mrf.mxu0
        %v766 = vadd.f32 %v734, %v765
        %767 = vmatmul.f32.gmra.mxu0 %v740
        %v768 = vpop.f32.mrf.mxu0
        %v769 = vadd.f32 %v734, %v768
        %770 = vmatmul.f32.gmra.mxu0 %v743
        %v771 = vpop.f32.mrf.mxu0
        %v772 = vadd.f32 %v734, %v771
        %773 = vmatmul.f32.gmra.mxu0 %v746
        %v774 = vpop.f32.mrf.mxu0
        %v775 = vadd.f32 %v734, %v774
        %776 = vdwg.mxu0
        %777 = vst [vmem:[#allocation2] sm:$0xff] %v766
        %778 = vst [vmem:[#allocation2 + $0x8] sm:$0xff] %v769
        %779 = vst [vmem:[#allocation2 + $0x10] sm:$0xff] %v772
        %780 = vst [vmem:[#allocation2 + $0x18] sm:$0xff] %v775
        %s781 = scalar_lea.vmem [#allocation4], 8
        %v782 = vld [vmem:[%s781] sm:$0xff]
        %s783 = scalar_lea.vmem [#allocation5], 8
        %v784 = vld [vmem:[%s783] sm:$0xff]
        %v785 = vld [vmem:[#allocation2] sm:$0xff]
        %v787 = vsel %vm439, %v782, 0
        %789 = vmatpush.msra.mxu0 0.0
        %790 = vmatpush.msra.mxu0 0.0
        %791 = vmatpush.msra.mxu0 0.0
        %792 = vmatpush.msra.mxu0 0.0
        %793 = vmatpush.msra.mxu0 0.0
        %794 = vmatpush.msra.mxu0 0.0
        %795 = vmatpush.msra.mxu0 0.0
        %796 = vmatpush.msra.mxu0 0.0
        %797 = vmatpush.msra.mxu0 0.0
        %798 = vmatpush.msra.mxu0 0.0
        %799 = vmatpush.msra.mxu0 0.0
        %800 = vmatpush.msra.mxu0 0.0
        %801 = vmatpush.msra.mxu0 %v727
        %802 = vmatpush.msra.mxu0 %v726
        %803 = vmatpush.msra.mxu0 %v725
        %804 = vmatpush.msra.mxu0 %v724
        %805 = vmatmul.f32.gmra.mxu0 %v787
        %v806 = vpop.f32.mrf.mxu0
        %v807 = vadd.f32 0.0, %v806
        %808 = vdwg.mxu0
        %v809 = vadd.f32 %v785, %v807
        %v810 = vxor.u32 %v809, 2147483648
        %v811 = vmul.f32 %v810, 1.442695
        %v812 = vpow.pop %v811
        %v813 = vadd.f32 %v812, 1.0
        %v814 = vrcp.pop %v813
        %v815 = vmul.f32 %v813, %v814
        %v816 = vsub.f32 1.0, %v815
        %v817 = vmul.f32 %v814, %v816
        %v818 = vadd.f32 %v814, %v817
        %vm819 = vweird.f32 %v813
        %vm820 = vweird.f32 %v814
        %vm821 = vmor %vm819, %vm820
        %v822 = vsel %vm821, %v814, %v818
        %v823 = vand.u32 2147483647, %v813
        %vm824 = vcmp.eq.f32.partialorder %v823, 8.507059e+37
        %v825 = vand.u32 %v813, 2147483648
        %v826 = vor.u32 1.1754944e-38, %v825
        %v827 = vsel %vm824, %v826, %v822
        %v828 = vmul.f32 1.0, %v827
        %v829 = vtanh.pop %v809
        %831 = vrot.lane.b32.xlu0 %v784, 32
        %v832 = vpop.permute.xlu0 %831
        %v834 = vmul.f32 %v828, %v832
        %836 = vrot.lane.b32.xlu0 %v829, 64
        %v837 = vpop.permute.xlu0 %836
        %v839 = vmul.f32 %v828, %v837
        %841 = vrot.lane.b32.xlu0 %v839, 32
        %v842 = vpop.permute.xlu0 %841
        %v844 = vadd.f32 %v834, %v842
        %v845 = vtanh.pop %v844
        %847 = vrot.lane.b32.xlu0 %v845, 64
        %v848 = vpop.permute.xlu0 %847
        %v850 = vmul.f32 %v828, %v848
        %852 = vrot.lane.b32.xlu0 %v850, 32
        %v853 = vpop.permute.xlu0 %852
        %855 = vst.msk [vmem:[#allocation3] sm:$0xff] %vm439, %v853
        %v856 = vld [vmem:[%s510] sm:$0xff]
        %v857 = vsel %vm439, %v853, 0
        %859 = vmatpush.msra.mxu0 0.0
        %860 = vmatpush.msra.mxu0 0.0
        %861 = vmatpush.msra.mxu0 0.0
        %862 = vmatpush.msra.mxu0 0.0
        %863 = vmatpush.msra.mxu0 0.0
        %864 = vmatpush.msra.mxu0 0.0
        %865 = vmatpush.msra.mxu0 0.0
        %866 = vmatpush.msra.mxu0 0.0
        %867 = vmatpush.msra.mxu0 0.0
        %868 = vmatpush.msra.mxu0 0.0
        %869 = vmatpush.msra.mxu0 0.0
        %870 = vmatpush.msra.mxu0 0.0
        %871 = vmatpush.msra.mxu0 %v727
        %872 = vmatpush.msra.mxu0 %v726
        %873 = vmatpush.msra.mxu0 %v725
        %874 = vmatpush.msra.mxu0 %v724
        %875 = vmatmul.f32.gmra.mxu0 %v857
        %v876 = vpop.f32.mrf.mxu0
        %v877 = vadd.f32 0.0, %v876
        %878 = vdwg.mxu0
        %v879 = vadd.f32 %v856, %v877
        %v880 = vxor.u32 %v879, 2147483648
        %v881 = vmul.f32 %v880, 1.442695
        %v882 = vpow.pop %v881
        %v883 = vadd.f32 %v882, 1.0
        %v884 = vrcp.pop %v883
        %v885 = vmul.f32 %v883, %v884
        %v886 = vsub.f32 1.0, %v885
        %v887 = vmul.f32 %v884, %v886
        %v888 = vadd.f32 %v884, %v887
        %vm889 = vweird.f32 %v883
        %vm890 = vweird.f32 %v884
        %vm891 = vmor %vm889, %vm890
        %v892 = vsel %vm891, %v884, %v888
        %v893 = vand.u32 2147483647, %v883
        %vm894 = vcmp.eq.f32.partialorder %v893, 8.507059e+37
        %v895 = vand.u32 %v883, 2147483648
        %v896 = vor.u32 1.1754944e-38, %v895
        %v897 = vsel %vm894, %v896, %v892
        %v898 = vmul.f32 1.0, %v897
        %v899 = vtanh.pop %v879
        %v900 = vmul.f32 %v898, %v844
        %902 = vrot.lane.b32.xlu0 %v899, 64
        %v903 = vpop.permute.xlu0 %902
        %v905 = vmul.f32 %v898, %v903
        %907 = vrot.lane.b32.xlu0 %v905, 32
        %v908 = vpop.permute.xlu0 %907
        %v910 = vadd.f32 %v900, %v908
        %v911 = vtanh.pop %v910
        %913 = vrot.lane.b32.xlu0 %v911, 64
        %v914 = vpop.permute.xlu0 %913
        %v916 = vmul.f32 %v898, %v914
        %918 = vrot.lane.b32.xlu0 %v916, 32
        %v919 = vpop.permute.xlu0 %918
        %921 = vst.msk [vmem:[%s576] sm:$0xff] %vm439, %v919
        %v922 = vld [vmem:[%s578] sm:$0xff]
        %v923 = vsel %vm439, %v919, 0
        %925 = vmatpush.msra.mxu0 0.0
        %926 = vmatpush.msra.mxu0 0.0
        %927 = vmatpush.msra.mxu0 0.0
        %928 = vmatpush.msra.mxu0 0.0
        %929 = vmatpush.msra.mxu0 0.0
        %930 = vmatpush.msra.mxu0 0.0
        %931 = vmatpush.msra.mxu0 0.0
        %932 = vmatpush.msra.mxu0 0.0
        %933 = vmatpush.msra.mxu0 0.0
        %934 = vmatpush.msra.mxu0 0.0
        %935 = vmatpush.msra.mxu0 0.0
        %936 = vmatpush.msra.mxu0 0.0
        %937 = vmatpush.msra.mxu0 %v727
        %938 = vmatpush.msra.mxu0 %v726
        %939 = vmatpush.msra.mxu0 %v725
        %940 = vmatpush.msra.mxu0 %v724
        %941 = vmatmul.f32.gmra.mxu0 %v923
        %v942 = vpop.f32.mrf.mxu0
        %v943 = vadd.f32 0.0, %v942
        %944 = vdwg.mxu0
        %v945 = vadd.f32 %v922, %v943
        %v946 = vxor.u32 %v945, 2147483648
        %v947 = vmul.f32 %v946, 1.442695
        %v948 = vpow.pop %v947
        %v949 = vadd.f32 %v948, 1.0
        %v950 = vrcp.pop %v949
        %v951 = vmul.f32 %v949, %v950
        %v952 = vsub.f32 1.0, %v951
        %v953 = vmul.f32 %v950, %v952
        %v954 = vadd.f32 %v950, %v953
        %vm955 = vweird.f32 %v949
        %vm956 = vweird.f32 %v950
        %vm957 = vmor %vm955, %vm956
        %v958 = vsel %vm957, %v950, %v954
        %v959 = vand.u32 2147483647, %v949
        %vm960 = vcmp.eq.f32.partialorder %v959, 8.507059e+37
        %v961 = vand.u32 %v949, 2147483648
        %v962 = vor.u32 1.1754944e-38, %v961
        %v963 = vsel %vm960, %v962, %v958
        %v964 = vmul.f32 1.0, %v963
        %v965 = vtanh.pop %v945
        %v966 = vmul.f32 %v964, %v910
        %968 = vrot.lane.b32.xlu0 %v965, 64
        %v969 = vpop.permute.xlu0 %968
        %v971 = vmul.f32 %v964, %v969
        %973 = vrot.lane.b32.xlu0 %v971, 32
        %v974 = vpop.permute.xlu0 %973
        %v976 = vadd.f32 %v966, %v974
        %v977 = vtanh.pop %v976
        %979 = vrot.lane.b32.xlu0 %v977, 64
        %v980 = vpop.permute.xlu0 %979
        %v982 = vmul.f32 %v964, %v980
        %984 = vrot.lane.b32.xlu0 %v982, 32
        %v985 = vpop.permute.xlu0 %984
        %987 = vst.msk [vmem:[%s644] sm:$0xff] %vm439, %v985
        %v988 = vld [vmem:[%s646] sm:$0xff]
        %v989 = vsel %vm439, %v985, 0
        %991 = vmatpush.msra.mxu0 0.0
        %992 = vmatpush.msra.mxu0 0.0
        %993 = vmatpush.msra.mxu0 0.0
        %994 = vmatpush.msra.mxu0 0.0
        %995 = vmatpush.msra.mxu0 0.0
        %996 = vmatpush.msra.mxu0 0.0
        %997 = vmatpush.msra.mxu0 0.0
        %998 = vmatpush.msra.mxu0 0.0
        %999 = vmatpush.msra.mxu0 0.0
        %1000 = vmatpush.msra.mxu0 0.0
        %1001 = vmatpush.msra.mxu0 0.0
        %1002 = vmatpush.msra.mxu0 0.0
        %1003 = vmatpush.msra.mxu0 %v727
        %1004 = vmatpush.msra.mxu0 %v726
        %1005 = vmatpush.msra.mxu0 %v725
        %1006 = vmatpush.msra.mxu0 %v724
        %1007 = vmatmul.f32.gmra.mxu0 %v989
        %v1008 = vpop.f32.mrf.mxu0
        %v1009 = vadd.f32 0.0, %v1008
        %1010 = vdwg.mxu0
        %v1011 = vadd.f32 %v988, %v1009
        %v1012 = vxor.u32 %v1011, 2147483648
        %v1013 = vmul.f32 %v1012, 1.442695
        %v1014 = vpow.pop %v1013
        %v1015 = vadd.f32 %v1014, 1.0
        %v1016 = vrcp.pop %v1015
        %v1017 = vmul.f32 %v1015, %v1016
        %v1018 = vsub.f32 1.0, %v1017
        %v1019 = vmul.f32 %v1016, %v1018
        %v1020 = vadd.f32 %v1016, %v1019
        %vm1021 = vweird.f32 %v1015
        %vm1022 = vweird.f32 %v1016
        %vm1023 = vmor %vm1021, %vm1022
        %v1024 = vsel %vm1023, %v1016, %v1020
        %v1025 = vand.u32 2147483647, %v1015
        %vm1026 = vcmp.eq.f32.partialorder %v1025, 8.507059e+37
        %v1027 = vand.u32 %v1015, 2147483648
        %v1028 = vor.u32 1.1754944e-38, %v1027
        %v1029 = vsel %vm1026, %v1028, %v1024
        %v1030 = vmul.f32 1.0, %v1029
        %v1031 = vtanh.pop %v1011
        %v1032 = vmul.f32 %v1030, %v976
        %1034 = vrot.lane.b32.xlu0 %v1031, 64
        %v1035 = vpop.permute.xlu0 %1034
        %v1037 = vmul.f32 %v1030, %v1035
        %1039 = vrot.lane.b32.xlu0 %v1037, 32
        %v1040 = vpop.permute.xlu0 %1039
        %v1042 = vadd.f32 %v1032, %v1040
        %v1043 = vtanh.pop %v1042
        %1045 = vrot.lane.b32.xlu0 %v1043, 64
        %v1046 = vpop.permute.xlu0 %1045
        %v1048 = vmul.f32 %v1030, %v1046
        %1050 = vrot.lane.b32.xlu0 %v1048, 32
        %v1051 = vpop.permute.xlu0 %1050
        %1053 = vst.msk [vmem:[%s712] sm:$0xff] %vm439, %v1051
        %1054 = vst.msk [vmem:[%s781] sm:$0xff] %vm439, %v1051
        %1056 = vrot.lane.b32.xlu0 %v1042, 96
        %v1057 = vpop.permute.xlu0 %1056
        %1059 = vst.msk [vmem:[%s783] sm:$0xff] %vm439, %v1057
        %v1060 = vld [vmem:[#allocation3] sm:$0xff]
        %v1061 = vld [vmem:[#allocation3 + $0x8] sm:$0xff]
        %v1062 = vld [vmem:[#allocation3 + $0x10] sm:$0xff]
        %v1063 = vld [vmem:[#allocation3 + $0x18] sm:$0xff]
        %v1064 = vld [vmem:[#allocation9] sm:$0xff]
        %v1065 = vld [vmem:[#allocation9 + $0x8] sm:$0xff]
        %v1066 = vld [vmem:[#allocation9 + $0x10] sm:$0xff]
        %v1067 = vld [vmem:[#allocation9 + $0x18] sm:$0xff]
        %v1069 = vsel %vm439, %v1060, 0
        %v1072 = vsel %vm439, %v1061, 0
        %v1075 = vsel %vm439, %v1062, 0
        %v1078 = vsel %vm439, %v1063, 0
        %1080 = vmatpush.msra.mxu0 0.0
        %1081 = vmatpush.msra.mxu0 0.0
        %1082 = vmatpush.msra.mxu0 0.0
        %1083 = vmatpush.msra.mxu0 0.0
        %1084 = vmatpush.msra.mxu0 0.0
        %1085 = vmatpush.msra.mxu0 0.0
        %1086 = vmatpush.msra.mxu0 0.0
        %1087 = vmatpush.msra.mxu0 0.0
        %1088 = vmatpush.msra.mxu0 0.0
        %1089 = vmatpush.msra.mxu0 0.0
        %1090 = vmatpush.msra.mxu0 0.0
        %1091 = vmatpush.msra.mxu0 0.0
        %1092 = vmatpush.msra.mxu0 %v1067
        %1093 = vmatpush.msra.mxu0 %v1066
        %1094 = vmatpush.msra.mxu0 %v1065
        %1095 = vmatpush.msra.mxu0 %v1064
        %1096 = vmatmul.f32.gmra.mxu0 %v1069
        %v1097 = vpop.f32.mrf.mxu0
        %v1098 = vadd.f32 0.0, %v1097
        %1099 = vmatmul.f32.gmra.mxu0 %v1072
        %v1100 = vpop.f32.mrf.mxu0
        %v1101 = vadd.f32 0.0, %v1100
        %1102 = vmatmul.f32.gmra.mxu0 %v1075
        %v1103 = vpop.f32.mrf.mxu0
        %v1104 = vadd.f32 0.0, %v1103
        %1105 = vmatmul.f32.gmra.mxu0 %v1078
        %v1106 = vpop.f32.mrf.mxu0
        %v1107 = vadd.f32 0.0, %v1106
        %1108 = vdwg.mxu0
        %1109 = vst [vmem:[%s353] sm:$0xff] %v1098
        %1110 = vst [vmem:[%s353 + $0x8] sm:$0xff] %v1101
        %1111 = vst [vmem:[%s353 + $0x10] sm:$0xff] %v1104
        %1112 = vst [vmem:[%s353 + $0x18] sm:$0xff] %v1107
        %s1113 = sand.u32 %s221, 1
        %s1114 = scalar_lea.sflag [#allocation8], %s1113
        %s1115 = sand.u32 %s221, 1
        %s1116 = smul.addr %s1115, 32
        %s1117 = scalar_lea.vmem [#allocation11], %s1116
        // Predicated region
        $region65: #{tpu_custom_call.1} parent=51 // pred_check
          %p1118 = pneg %p231
        $region66: #{tpu_custom_call.1} parent=51 // pred_check_branch
          %1120 = sbr.rel (%p1118) target = $region68
        $region67: #{tpu_custom_call.1} parent=51 // pred_region
          %s1121 = smul.u32 4, %s29
          %1123 = vsyncadd %s1114, 0
          %s1124 = sadd.s32 %s28, %s1121
          %s1125 = smul.addr %s1124, 8
          %s1126 = scalar_lea.hbm %s8, %s1125
          %s1127 = sshll.u32 %s1117, 4
          %s1128 = int_to_ptr.vmem [resolvable:$true] %s1127
          %s1129 = sshll.u32 %s1126, 4
          %s1130 = int_to_ptr.hbm [resolvable:$true] %s1129
          %1135 = dma.vmem_to_hbm [thread:$0]  %s1128, 512, %s1130, %s1114, 128, 128, 8
        $region68: #{tpu_custom_call.1} parent=51 // pred_fallthru
          _
      $region52: #{tpu_custom_call.1} parent=5 // pred_fallthru
        _
      %p1136 = scmp.le.s32.totalorder 2, %s19
      // Predicated region
      $region69: #{tpu_custom_call.1} parent=5 // pred_check
        %p1137 = pneg %p1136
      $region70: #{tpu_custom_call.1} parent=5 // pred_check_branch
        %1139 = sbr.rel (%p1137) target = $region72
      $region71: #{tpu_custom_call.1} parent=5 // pred_region
        %s1140 = ssub.s32 %s19, 2
        // Predicated region
        $region73: #{tpu_custom_call.1} parent=71 // pred_check
          %p1141 = pneg %p237
        $region74: #{tpu_custom_call.1} parent=71 // pred_check_branch
          %1143 = sbr.rel (%p1141) target = $region76
        $region75: #{tpu_custom_call.1} parent=71 // pred_region
          %s1144 = sand.u32 %s222, 1
          %s1145 = scalar_lea.sflag [#allocation8], %s1144
          %s1146 = sand.u32 %s222, 1
          %s1147 = smul.addr %s1146, 32
          %s1148 = scalar_lea.vmem [#allocation11], %s1147
          %1150 = dma.done %s1145, 512
        $region76: #{tpu_custom_call.1} parent=71 // pred_fallthru
          _
      $region72: #{tpu_custom_call.1} parent=5 // pred_fallthru
        _
    $region6: #{tpu_custom_call.1} parent=1 // loop_footer
      %s23 = sadd.s32 1, %s19
    $region7: #{tpu_custom_call.1} parent=1 // loop_footer_branch
      %18 = sbr.rel target = $region3
    $region8: #{tpu_custom_call.1} parent=1 // loop_exit
      _
    %1151 = vsyncpa [#allocation7], 1
    %s1152 = scalar_lea.sflag [#allocation7], 1
    %1153 = vsyncpa %s1152, 1
    %1154 = vsyncpa [#allocation10], 1
    %1155 = vsyncpa [#allocation8], 1
    %s1156 = scalar_lea.sflag [#allocation8], 1
    %1157 = vsyncpa %s1156, 1

</llo_original>
